<compile_context>
chip_gen: v7x
topology: tpu7x:2x2x1
jax: 0.10.0
libtpu: 0.0.40
codegen_flags: <defaults>
</compile_context>

<pallas_src>
import functools

import jax
import jax.numpy as jnp
from jax.experimental import pallas as pl
from jax.experimental.pallas import tpu as pltpu


# In + out blocks, each double-buffered by the pipeline => ~4x block bytes
# resident.  8 MiB keeps us well inside every generation's scoped VMEM.
_VMEM_BUDGET_BYTES = 8 * 1024 * 1024


# --------------------------------------------------------------------------
# Kernels
# --------------------------------------------------------------------------
def _copy_kernel(x_ref, o_ref):
    # Pure data movement: the axis reorder is fully encoded in the BlockSpec
    # index_maps.  In/out blocks hold identical (T, L) data; only unit dims
    # sit at different positions, so the reshape is layout-free.
    o_ref[...] = x_ref[...].reshape(o_ref.shape)


def _swap_collapsed_kernel(x_ref, o_ref):
    # x_ref: (1, P, TQ)  ->  o_ref: (1, 1, TQ*P)   (lane-dense store)
    xt = jnp.transpose(x_ref[...], (0, 2, 1))        # (1, TQ, P)  (XLU)
    o_ref[...] = xt.reshape(o_ref.shape)              # relayout to full lanes


def _swap_kernel(x_ref, o_ref):
    # x_ref: (1, P, TQ)  ->  o_ref: (1, TQ, P)   (natural-layout store)
    o_ref[...] = jnp.transpose(x_ref[...], (0, 2, 1))


def _transpose_kernel(axes, x_ref, o_ref):
    o_ref[...] = jnp.transpose(x_ref[...], axes)


# --------------------------------------------------------------------------
# Helpers
# --------------------------------------------------------------------------
def _merge_axes(shape, axes):
    """Merge runs of input axes that appear consecutively & in-order in the
    output.  Reshaping the input to the merged shape (and the merged output to
    the true output shape) only fuses adjacent dims, i.e. is free."""
    groups = []  # runs of consecutive input axes, in output order
    for a in axes:
        if groups and a == groups[-1][-1] + 1:
            groups[-1].append(a)
        else:
            groups.append([a])
    order = sorted(range(len(groups)), key=lambda gi: groups[gi][0])
    merged_in_shape = []
    new_axis_of_group = {}
    for new_ax, gi in enumerate(order):
        size = 1
        for a in groups[gi]:
            size *= shape[a]
        merged_in_shape.append(size)
        new_axis_of_group[gi] = new_ax
    merged_axes = tuple(new_axis_of_group[gi] for gi in range(len(groups)))
    return tuple(merged_in_shape), merged_axes


def _fit_rows(dim, max_rows):
    """Largest divisor of `dim` that fits `max_rows`: the full dim if it fits,
    else a multiple-of-8 divisor, else 1 (sublane-friendly second-minor)."""
    if dim <= max_rows:
        return dim
    t = dim
    while t % 2 == 0 and t > max_rows:
        t //= 2
    if t <= max_rows and t % 8 == 0:
        return t
    return 1


def _choose_q_tile(q, p, itemsize, budget):
    """Largest divisor TQ of q (full q, or a multiple of 128) such that the
    double-buffered in+out blocks (~4*P*TQ*itemsize) fit the VMEM budget."""
    max_elems = max(budget // (4 * itemsize), 128)
    tq = q
    while p * tq > max_elems and tq % 2 == 0 and (tq // 2) % 128 == 0:
        tq //= 2
    return tq


# --------------------------------------------------------------------------
# Path B: last (lane) axis does not move -> pure-DMA reorder, copy body.
# --------------------------------------------------------------------------
def _permute_copy(xm, maxes):
    n = xm.ndim
    in_shape = xm.shape
    out_shape = tuple(in_shape[a] for a in maxes)
    lane = in_shape[n - 1]
    j = maxes[-2]  # input axis that lands in the output's second-minor slot
    itemsize = jnp.dtype(xm.dtype).itemsize

    max_rows = max(_VMEM_BUDGET_BYTES // (4 * lane * itemsize), 1)
    t = _fit_rows(in_shape[j], max_rows)

    inv = [0] * n
    for o, a in enumerate(maxes):
        inv[a] = o

    in_block = [1] * n
    in_block[j] = t
    in_block[n - 1] = lane
    out_block = [1] * n
    out_block[n - 2] = t
    out_block[n - 1] = lane

    grid = tuple(out_shape[: n - 2]) + (out_shape[n - 2] // t,)

    def in_index_map(*g):
        return tuple(g[inv[k]] for k in range(n - 1)) + (0,)

    def out_index_map(*g):
        return tuple(g) + (0,)

    return pl.pallas_call(
        _copy_kernel,
        out_shape=jax.ShapeDtypeStruct(out_shape, xm.dtype),
        grid=grid,
        in_specs=[pl.BlockSpec(tuple(in_block), in_index_map)],
        out_specs=pl.BlockSpec(tuple(out_block), out_index_map),
        compiler_params=pltpu.CompilerParams(
            dimension_semantics=("parallel",) * len(grid)),
    )(xm)


# --------------------------------------------------------------------------
# Path C: batched transpose of the two minor axes (the NCHW->NHWC case).
# --------------------------------------------------------------------------
def _permute_minor_swap(xm):
    n = xm.ndim
    p, q = xm.shape[n - 2], xm.shape[n - 1]
    b = 1
    for d in xm.shape[: n - 2]:
        b *= d
    x3 = xm.reshape(b, p, q)

    itemsize = jnp.dtype(xm.dtype).itemsize
    tq = _choose_q_tile(q, p, itemsize, _VMEM_BUDGET_BYTES)
    nq = q // tq
    grid = (b, nq)

    in_spec = pl.BlockSpec((1, p, tq), lambda bi, qi: (bi, 0, qi))
    params = pltpu.CompilerParams(
        dimension_semantics=("parallel", "parallel"))

    if p < 128:
        # Lane-dense output: present the output as (B, NQ, TQ*P) so every
        # store is a full-width unmasked vst (biggest measured lever); the
        # wrapper reshapes back to the true output shape for free.
        try:
            out = pl.pallas_call(
                _swap_collapsed_kernel,
                out_shape=jax.ShapeDtypeStruct((b, nq, tq * p), xm.dtype),
                grid=grid,
                in_specs=[in_spec],
                out_specs=pl.BlockSpec((1, 1, tq * p),
                                       lambda bi, qi: (bi, qi, 0)),
                compiler_params=params,
            )(x3)
            return jax.block_until_ready(out)
        except Exception:
            # Mosaic versions that cannot lower the in-kernel minor-dim
            # collapse fall back to the natural-layout store below.
            pass

    return pl.pallas_call(
        _swap_kernel,
        out_shape=jax.ShapeDtypeStruct((b, q, p), xm.dtype),
        grid=grid,
        in_specs=[in_spec],
        out_specs=pl.BlockSpec((1, tq, p), lambda bi, qi: (bi, qi, 0)),
        compiler_params=params,
    )(x3)


# --------------------------------------------------------------------------
# Path D: general fallback.  The input's minor two axes and the axes that land
# in the output's minor two positions stay whole inside the block; every other
# axis is iterated by a parallel grid (still pipelined).
# --------------------------------------------------------------------------
def _permute_general(xm, maxes):
    n = xm.ndim
    in_shape = xm.shape
    out_shape = tuple(in_shape[a] for a in maxes)

    inv = [0] * n
    for o, a in enumerate(maxes):
        inv[a] = o

    s_in = {n - 2, n - 1, maxes[-2], maxes[-1]}
    s_out = {inv[a] for a in s_in}

    grid_pos = [o for o in range(n) if o not in s_out]
    pos_to_g = {o: i for i, o in enumerate(grid_pos)}

    in_block = tuple(in_shape[k] if k in s_in else 1 for k in range(n))
    out_block = tuple(out_shape[o] if o in s_out else 1 for o in range(n))

    if grid_pos:
        grid = tuple(out_shape[o] for o in grid_pos)

        def in_index_map(*g):
            return tuple(0 if k in s_in else g[pos_to_g[inv[k]]]
                         for k in range(n))

        def out_index_map(*g):
            return tuple(0 if o in s_out else g[pos_to_g[o]]
                         for o in range(n))

        semantics = ("parallel",) * len(grid)
    else:
        # Every axis participates in the minor transpose.
        # TODO(synk): tile inside the block for very large inputs.
        grid = (1,)

        def in_index_map(i):
            return (0,) * n

        def out_index_map(i):
            return (0,) * n

        semantics = ("arbitrary",)

    return pl.pallas_call(
        functools.partial(_transpose_kernel, maxes),
        out_shape=jax.ShapeDtypeStruct(out_shape, xm.dtype),
        grid=grid,
        in_specs=[pl.BlockSpec(in_block, in_index_map)],
        out_specs=pl.BlockSpec(out_block, out_index_map),
        compiler_params=pltpu.CompilerParams(dimension_semantics=semantics),
    )(xm)


# --------------------------------------------------------------------------
# Public wrapper (equivalent of torch.Tensor.permute(axes))
# --------------------------------------------------------------------------
def pallas_permute(x, axes):
    axes = tuple(int(a) for a in axes)
    ndim = x.ndim
    assert len(axes) == ndim and sorted(axes) == list(range(ndim)), axes
    out_shape = tuple(x.shape[a] for a in axes)

    if ndim == 0 or axes == tuple(range(ndim)):
        return x  # identity permutation: no data movement at all

    in_mshape, maxes = _merge_axes(x.shape, axes)
    n = len(maxes)
    if n == 1:
        return jnp.reshape(x, out_shape)

    xm = jnp.reshape(x, in_mshape)  # free: only fuses adjacent dims

    if maxes[-1] == n - 1:
        om = _permute_copy(xm, maxes)                       # pure-DMA reorder
    elif maxes == tuple(range(n - 2)) + (n - 1, n - 2):
        om = _permute_minor_swap(xm)                        # NCHW->NHWC case
    else:
        om = _permute_general(xm, maxes)                    # general fallback

    # TODO(synk): for sub-32-bit dtypes whose channel axis moves to the lane
    # dim, pack pairs (2x bf16 -> u32) with pltpu.bitcast before the relayout.
    return jnp.reshape(om, out_shape)  # free: only splits adjacent dims


class Permute:
    """Thin mirror of the PyTorch nn.Module."""

    def __init__(self, axes):
        self.axes = tuple(int(a) for a in axes)

    def __call__(self, x):
        return pallas_permute(x, self.axes)


if __name__ == "__main__":
    key = jax.random.PRNGKey(0)
    # NCHW input, matching the PyTorch conv layout used with this module.
    x = jax.random.normal(key, (2, 4, 16, 16), dtype=jnp.float32)
    axes = (0, 2, 3, 1)  # NCHW -> NHWC, same as nn.Module Permute(axes)

    module = Permute(axes)
    out = jax.block_until_ready(module(x))

    ref = jnp.transpose(x, axes)
    assert out.shape == ref.shape, (out.shape, ref.shape)
    assert out.dtype == ref.dtype, (out.dtype, ref.dtype)
    assert bool(jnp.array_equal(out, ref))

    print("KERNEL_OK")
</pallas_src>

<mosaic_0001>
module attributes {stable_mosaic.version = 11 : i64} {
  func.func @_swap_collapsed_kernel(%arg0: i32, %arg1: i32, %arg2: memref<1x4x256xf32, #tpu.memory_space<vmem>>, %arg3: memref<1x1x1024xf32, #tpu.memory_space<vmem>>) attributes {dimension_semantics = [#tpu.dimension_semantics<parallel>, #tpu.dimension_semantics<parallel>], iteration_bounds = array<i64: 2, 1>, scalar_prefetch = 0 : i64, scratch_operands = 0 : i64, tpu.core_type = #tpu.core_type<tc>, window_params = [{transform_indices = @transform_0, window_bounds = array<i64: 1, 4, 256>}, {transform_indices = @transform_1, window_bounds = array<i64: 1, 1, 1024>}]} {
    %c0 = arith.constant 0 : index
    %c0_0 = arith.constant 0 : index
    %c0_1 = arith.constant 0 : index
    %0 = vector.load %arg2[%c0, %c0_0, %c0_1] : memref<1x4x256xf32, #tpu.memory_space<vmem>>, vector<1x4x256xf32>
    %1 = tpu.transpose %0, [0, 2, 1] : vector<1x4x256xf32> -> vector<1x256x4xf32>
    %2 = vector.shape_cast %1 : vector<1x256x4xf32> to vector<1x1x1024xf32>
    %c0_2 = arith.constant 0 : index
    %c0_3 = arith.constant 0 : index
    %c0_4 = arith.constant 0 : index
    %3 = vector.load %arg3[%c0_2, %c0_3, %c0_4] : memref<1x1x1024xf32, #tpu.memory_space<vmem>>, vector<1x1x1024xf32>
    tpu.vector_store %arg3[%c0_2, %c0_3, %c0_4], %2 {strides = array<i32>} : memref<1x1x1024xf32, #tpu.memory_space<vmem>>, vector<1x1x1024xf32>,
    return
  }
  func.func @transform_0(%arg0: i32, %arg1: i32) -> (i32, i32, i32) {
    %c0_i32 = arith.constant 0 : i32
    %c0_i32_0 = arith.constant 0 : i32
    return %arg0, %c0_i32, %arg1 : i32, i32, i32
  }
  func.func @transform_1(%arg0: i32, %arg1: i32) -> (i32, i32, i32) {
    %c0_i32 = arith.constant 0 : i32
    %c0_i32_0 = arith.constant 0 : i32
    return %arg0, %arg1, %c0_i32 : i32, i32, i32
  }
}

module attributes {stable_mosaic.version = 11 : i64} {
  func.func @_swap_kernel(%arg0: i32, %arg1: i32, %arg2: memref<1x4x256xf32, #tpu.memory_space<vmem>>, %arg3: memref<1x256x4xf32, #tpu.memory_space<vmem>>) attributes {dimension_semantics = [#tpu.dimension_semantics<parallel>, #tpu.dimension_semantics<parallel>], iteration_bounds = array<i64: 2, 1>, scalar_prefetch = 0 : i64, scratch_operands = 0 : i64, tpu.core_type = #tpu.core_type<tc>, window_params = [{transform_indices = @transform_0, window_bounds = array<i64: 1, 4, 256>}, {transform_indices = @transform_1, window_bounds = array<i64: 1, 256, 4>}]} {
    %c0 = arith.constant 0 : index
    %c0_0 = arith.constant 0 : index
    %c0_1 = arith.constant 0 : index
    %0 = vector.load %arg2[%c0, %c0_0, %c0_1] : memref<1x4x256xf32, #tpu.memory_space<vmem>>, vector<1x4x256xf32>
    %1 = tpu.transpose %0, [0, 2, 1] : vector<1x4x256xf32> -> vector<1x256x4xf32>
    %c0_2 = arith.constant 0 : index
    %c0_3 = arith.constant 0 : index
    %c0_4 = arith.constant 0 : index
    %2 = vector.load %arg3[%c0_2, %c0_3, %c0_4] : memref<1x256x4xf32, #tpu.memory_space<vmem>>, vector<1x256x4xf32>
    tpu.vector_store %arg3[%c0_2, %c0_3, %c0_4], %1 {strides = array<i32>} : memref<1x256x4xf32, #tpu.memory_space<vmem>>, vector<1x256x4xf32>,
    return
  }
  func.func @transform_0(%arg0: i32, %arg1: i32) -> (i32, i32, i32) {
    %c0_i32 = arith.constant 0 : i32
    %c0_i32_0 = arith.constant 0 : i32
    return %arg0, %c0_i32, %arg1 : i32, i32, i32
  }
  func.func @transform_1(%arg0: i32, %arg1: i32) -> (i32, i32, i32) {
    %c0_i32 = arith.constant 0 : i32
    %c0_i32_0 = arith.constant 0 : i32
    return %arg0, %arg1, %c0_i32 : i32, i32, i32
  }
}

</mosaic_0001>

<llo_original>
// kernel: tpu_custom_call.1
$region0: #{tpu_custom_call.1}
  #allocation0 [shape = 'u32[]', space=smem, size = 0x4, offset = 0x4, fixed_abs, tag = 'smem constant byte address 0x4 - core index']
  #allocation1 [shape = 'u32[144,128]{1,0:T(1,128)}', space=vmem, size = 0x12000, scoped, tag = 'internal scratch']
  %s0 = inlined_call_operand.hbm [shape: f32[2,4,256], index: 0, kind: input, shape index: {}]
  %s1 = inlined_call_operand.hbm [shape: f32[2,1,1024], index: 1, kind: output, shape index: {}]
  %s2 = sld [smem:[#allocation0]]
  $region41: #{tpu_custom_call.1} parent=0
    _
  %s4 = ssub.s32 1, %s2
  %s5 = scalar_select 0, %s4, %s2
  $region1: #{tpu_custom_call.1} parent=0
    #allocation2 [shape = 'u8[8192]{0}', space=vmem, size = 0x2000, scoped, tag = 'input window, operand 0']
    #allocation3 [shape = 's32[2]{0}', space=sflag, size = 0x8, scoped, tag = 'scoped memory for tpu_custom_call.1']
    #allocation4 [shape = 's32[2]{0}', space=sflag, size = 0x8, scoped, tag = 'scoped memory for tpu_custom_call.1']
    #allocation5 [shape = 'u8[8192]{0}', space=vmem, size = 0x2000, scoped, tag = 'output window, operand 0']
    %6 = vsyncpa [#allocation3], 0
    %s7 = scalar_lea.sflag [#allocation3], 1
    %8 = vsyncpa %s7, 0
    %9 = vsyncpa [#allocation4], 0
    %s10 = scalar_lea.sflag [#allocation4], 1
    %11 = vsyncpa %s10, 0
    loop: start=0, step=1, limit=4
    $region2: #{tpu_custom_call.1} parent=1 // loop_pre_header
      _
    $region3: #{tpu_custom_call.1} parent=1 // loop_header
      %s13 = sphi 0, %s17
      %p14 = scmp.ge.s32.totalorder %s13, 4
      %s20 = sphi 0, %s32
      %s21 = sphi 0, %s28
      %s22 = sphi 0, %s20
      %s23 = sphi 0, %s21
      %s24 = sphi 0, %s22
      %s25 = sphi 0, %s23
      %s37 = sphi 0, %s39
      %s40 = sphi 0, %s37
      %s41 = sphi 0, %s40
      %s57 = sphi 0, %s41
      %s65 = sphi 0, %s67
      %s68 = sphi 0, %s65
      %s69 = sphi 0, %s68
      %s85 = sphi 0, %s69
    $region4: #{tpu_custom_call.1} parent=1 // loop_header_branch
      %16 = sbr.rel (%p14) target = $region8
    $region5: #{tpu_custom_call.1} parent=1 // loop_body
      %s18 = ssub.s32 %s13, 1
      %s19 = ssub.s32 %s13, 2
      %s26 = sadd.s32 1, %s21
      %p27 = scmp.ge.s32.totalorder %s26, 1
      %s28 = scalar_select %p27, 0, %s26
      %s29 = sadd.s32 1, %s20
      %s30 = scalar_select %p27, %s29, %s20
      %p31 = scmp.ge.s32.totalorder %s30, 2
      %s32 = scalar_select %p31, 0, %s30
      %s33 = ssub.s32 %s20, %s32
      %s34 = ssub.s32 %s21, %s28
      %s35 = sor.u32 %s33, %s34
      %p36 = scmp.eq.s32.totalorder %s35, 0
      %s38 = sadd.s32 %s37, 1
      %s39 = scalar_select %p36, %s37, %s38
      %p42 = pneg %p36
      %p43 = scmp.eq.s32.totalorder %s13, 1
      %p44 = por %p42, %p43
      %p45 = scmp.ne.s32.totalorder %s37, %s40
      %p46 = scmp.eq.s32.totalorder %s13, 0
      %p47 = por %p45, %p46
      %p48 = scmp.ne.s32.totalorder %s37, %s40
      %p49 = scmp.eq.s32.totalorder %s18, 1
      %p50 = por %p48, %p49
      %p51 = scmp.ne.s32.totalorder %s40, %s41
      %p52 = scmp.eq.s32.totalorder %s18, 0
      %p53 = por %p51, %p52
      %p54 = scmp.ne.s32.totalorder %s40, %s41
      %p55 = scmp.eq.s32.totalorder %s19, 1
      %p56 = por %p54, %p55
      %p58 = scmp.ne.s32.totalorder %s41, %s57
      %p59 = scmp.eq.s32.totalorder %s19, 0
      %p60 = por %p58, %p59
      %s61 = ssub.s32 %s20, %s32
      %s62 = ssub.s32 %s21, %s28
      %s63 = sor.u32 %s61, %s62
      %p64 = scmp.eq.s32.totalorder %s63, 0
      %s66 = sadd.s32 %s65, 1
      %s67 = scalar_select %p64, %s65, %s66
      %p70 = pneg %p64
      %p71 = scmp.eq.s32.totalorder %s13, 1
      %p72 = por %p70, %p71
      %p73 = scmp.ne.s32.totalorder %s65, %s68
      %p74 = scmp.eq.s32.totalorder %s13, 0
      %p75 = por %p73, %p74
      %p76 = scmp.ne.s32.totalorder %s65, %s68
      %p77 = scmp.eq.s32.totalorder %s18, 1
      %p78 = por %p76, %p77
      %p79 = scmp.ne.s32.totalorder %s68, %s69
      %p80 = scmp.eq.s32.totalorder %s18, 0
      %p81 = por %p79, %p80
      %p82 = scmp.ne.s32.totalorder %s68, %s69
      %p83 = scmp.eq.s32.totalorder %s19, 1
      %p84 = por %p82, %p83
      %p86 = scmp.ne.s32.totalorder %s69, %s85
      %p87 = scmp.eq.s32.totalorder %s19, 0
      %p88 = por %p86, %p87
      %p89 = scmp.le.s32.totalorder 1, %s13
      %p90 = scmp.lt.s32.totalorder %s13, 3
      %p91 = pnand %p89, %p90
      %p92 = pneg %p91
      // Predicated region
      $region9: #{tpu_custom_call.1} parent=5 // pred_check
        _
      $region10: #{tpu_custom_call.1} parent=5 // pred_check_branch
        %94 = sbr.rel (%p91) target = $region12
      $region11: #{tpu_custom_call.1} parent=5 // pred_region
        %s95 = ssub.s32 %s13, 1
      $region12: #{tpu_custom_call.1} parent=5 // pred_fallthru
        _
      %p96 = scmp.lt.s32.totalorder %s13, 2
      // Predicated region
      $region13: #{tpu_custom_call.1} parent=5 // pred_check
        %p97 = pneg %p96
      $region14: #{tpu_custom_call.1} parent=5 // pred_check_branch
        %99 = sbr.rel (%p97) target = $region16
      $region15: #{tpu_custom_call.1} parent=5 // pred_region
        // Predicated region
        $region17: #{tpu_custom_call.1} parent=15 // pred_check
          %p100 = pneg %p47
        $region18: #{tpu_custom_call.1} parent=15 // pred_check_branch
          %102 = sbr.rel (%p100) target = $region20
        $region19: #{tpu_custom_call.1} parent=15 // pred_region
          %s103 = sand.u32 %s37, 1
          %s104 = scalar_lea.sflag [#allocation3], %s103
          %s105 = sand.u32 %s37, 1
          %s106 = smul.addr %s105, 8
          %s107 = scalar_lea.vmem [#allocation2], %s106
          %s108 = smul.u32 2, %s21
          %s110 = ssub.s32 128, 128
          %111 = vsyncadd %s104, %s110
          %s112 = smul.addr %s20, 2
          %s113 = sadd.s32 %s108, %s112
          %s114 = smul.addr %s113, 64
          %s115 = scalar_lea.hbm %s0, %s114
          %s117 = sshll.u32 %s107, 4
          %s118 = int_to_ptr.vmem [resolvable:$true] %s117
          %120 = dma.hbm_to_vmem [thread:$0]  %s115, 128, %s118, %s104
        $region20: #{tpu_custom_call.1} parent=15 // pred_fallthru
          _
      $region16: #{tpu_custom_call.1} parent=5 // pred_fallthru
        _
      %p121 = scmp.le.s32.totalorder 1, %s13
      %p122 = scmp.lt.s32.totalorder %s13, 3
      %p123 = pnand %p121, %p122
      %p124 = pneg %p123
      // Predicated region
      $region21: #{tpu_custom_call.1} parent=5 // pred_check
        _
      $region22: #{tpu_custom_call.1} parent=5 // pred_check_branch
        %126 = sbr.rel (%p123) target = $region24
      $region23: #{tpu_custom_call.1} parent=5 // pred_region
        %s127 = ssub.s32 %s13, 1
        %s128 = sand.u32 %s40, 1
        %s129 = scalar_lea.sflag [#allocation3], %s128
        %s130 = sand.u32 %s40, 1
        %s131 = smul.addr %s130, 8
        %s132 = scalar_lea.vmem [#allocation2], %s131
        // Predicated region
        $region25: #{tpu_custom_call.1} parent=23 // pred_check
          %p133 = pneg %p53
        $region26: #{tpu_custom_call.1} parent=23 // pred_check_branch
          %135 = sbr.rel (%p133) target = $region28
        $region27: #{tpu_custom_call.1} parent=23 // pred_region
          %136 = dma.done %s129, 128
        $region28: #{tpu_custom_call.1} parent=23 // pred_fallthru
          _
        %s137 = sand.u32 %s40, 1
        %s138 = scalar_lea.sflag [#allocation3], %s137
        %s139 = sand.u32 %s40, 1
        %s140 = smul.addr %s139, 8
        %s141 = scalar_lea.vmem [#allocation2], %s140
        %p142 = pneg %p53
        %p143 = pneg %p50
        %p144 = pneg %p81
        %p145 = pneg %p78
        %s146 = sand.u32 %s68, 1
        %s147 = scalar_lea.sflag [#allocation4], %s146
        %s148 = sand.u32 %s68, 1
        %s149 = smul.addr %s148, 8
        %s150 = scalar_lea.vmem [#allocation5], %s149
        %s151 = smul.u32 2, %s23
        %v152 = vld [vmem:[%s132] sm:$0xff]
        %v154 = vcombine.high %v152, %v152
        %156 = vxpose.xlu0.b32.start [1/16] %v152, 128
        %157 = vxpose.xlu0.b32.cont [2/16] 0.0, 128
        %158 = vxpose.xlu0.b32.cont [3/16] 0.0, 128
        %159 = vxpose.xlu0.b32.cont [4/16] 0.0, 128
        %160 = vxpose.xlu0.b32.cont [5/16] 0.0, 128
        %161 = vxpose.xlu0.b32.cont [6/16] 0.0, 128
        %162 = vxpose.xlu0.b32.cont [7/16] 0.0, 128
        %163 = vxpose.xlu0.b32.cont [8/16] 0.0, 128
        %164 = vxpose.xlu0.b32.cont [9/16] 0.0, 128
        %165 = vxpose.xlu0.b32.cont [10/16] 0.0, 128
        %166 = vxpose.xlu0.b32.cont [11/16] 0.0, 128
        %167 = vxpose.xlu0.b32.cont [12/16] 0.0, 128
        %168 = vxpose.xlu0.b32.cont [13/16] 0.0, 128
        %169 = vxpose.xlu0.b32.cont [14/16] 0.0, 128
        %170 = vxpose.xlu0.b32.cont [15/16] 0.0, 128
        %171 = vxpose.xlu0.b32.end [16/16] 0.0, 128
        %v172 = vpop.trf.xlu0
        %v173 = vpop.trf.xlu0
        %v174 = vpop.trf.xlu0
        %v175 = vpop.trf.xlu0
        %v176 = vpop.trf.xlu0
        %v177 = vpop.trf.xlu0
        %v178 = vpop.trf.xlu0
        %v179 = vpop.trf.xlu0
        %v180 = vpop.trf.xlu0
        %v181 = vpop.trf.xlu0
        %v182 = vpop.trf.xlu0
        %v183 = vpop.trf.xlu0
        %v184 = vpop.trf.xlu0
        %v185 = vpop.trf.xlu0
        %v186 = vpop.trf.xlu0
        %v187 = vpop.trf.xlu0
        %188 = vxpose.xlu0.b32.start [1/16] %v154, 128
        %189 = vxpose.xlu0.b32.cont [2/16] 0.0, 128
        %190 = vxpose.xlu0.b32.cont [3/16] 0.0, 128
        %191 = vxpose.xlu0.b32.cont [4/16] 0.0, 128
        %192 = vxpose.xlu0.b32.cont [5/16] 0.0, 128
        %193 = vxpose.xlu0.b32.cont [6/16] 0.0, 128
        %194 = vxpose.xlu0.b32.cont [7/16] 0.0, 128
        %195 = vxpose.xlu0.b32.cont [8/16] 0.0, 128
        %196 = vxpose.xlu0.b32.cont [9/16] 0.0, 128
        %197 = vxpose.xlu0.b32.cont [10/16] 0.0, 128
        %198 = vxpose.xlu0.b32.cont [11/16] 0.0, 128
        %199 = vxpose.xlu0.b32.cont [12/16] 0.0, 128
        %200 = vxpose.xlu0.b32.cont [13/16] 0.0, 128
        %201 = vxpose.xlu0.b32.cont [14/16] 0.0, 128
        %202 = vxpose.xlu0.b32.cont [15/16] 0.0, 128
        %203 = vxpose.xlu0.b32.end [16/16] 0.0, 128
        %v204 = vpop.trf.xlu0
        %v205 = vpop.trf.xlu0
        %v206 = vpop.trf.xlu0
        %v207 = vpop.trf.xlu0
        %v208 = vpop.trf.xlu0
        %v209 = vpop.trf.xlu0
        %v210 = vpop.trf.xlu0
        %v211 = vpop.trf.xlu0
        %v212 = vpop.trf.xlu0
        %v213 = vpop.trf.xlu0
        %v214 = vpop.trf.xlu0
        %v215 = vpop.trf.xlu0
        %v216 = vpop.trf.xlu0
        %v217 = vpop.trf.xlu0
        %v218 = vpop.trf.xlu0
        %v219 = vpop.trf.xlu0
        %v220 = vcombine.high %v172, 0.0
        %v222 = vunpack.c.l.s4 1983009808
        %v223 = vunpack.c.0.s8 %v222
        %v224 = vlaneseq
        %v225 = vshrl.u32 %v224, 7
        %v226 = vsub.s32 %v223, %v225
        %v227 = vrot.slane %v172, %v226
        %v229 = vunpack.c.l.s4 1983009808
        %v230 = vunpack.c.0.s8 %v229
        %v231 = vlaneseq
        %v232 = vshrl.u32 %v231, 7
        %v233 = vsub.s32 %v230, %v232
        %v234 = vrot.slane %v220, %v233
        %v235 = vcombine.high %v227, 0.0
        %v237 = vunpack.c.l.s4 1934713408
        %v238 = vunpack.c.0.s8 %v237
        %v239 = vlaneseq
        %v240 = vshrl.u32 %v239, 7
        %v241 = vsub.s32 %v238, %v240
        %v242 = vrot.slane %v227, %v241
        %v244 = vunpack.c.l.s4 1934713408
        %v245 = vunpack.c.0.s8 %v244
        %v246 = vlaneseq
        %v247 = vshrl.u32 %v246, 7
        %v248 = vsub.s32 %v245, %v247
        %v249 = vrot.slane %v235, %v248
        %v250 = vcombine.high %v234, 0.0
        %v252 = vunpack.c.l.s4 1934713408
        %v253 = vunpack.c.0.s8 %v252
        %v254 = vlaneseq
        %v255 = vshrl.u32 %v254, 7
        %v256 = vsub.s32 %v253, %v255
        %v257 = vrot.slane %v234, %v256
        %v259 = vunpack.c.l.s4 1934713408
        %v260 = vunpack.c.0.s8 %v259
        %v261 = vlaneseq
        %v262 = vshrl.u32 %v261, 7
        %v263 = vsub.s32 %v260, %v262
        %v264 = vrot.slane %v250, %v263
        %v265 = vcombine.high %v242, 0.0
        %v266 = vcombine.high %v249, 0.0
        %v267 = vcombine.high %v257, 0.0
        %v268 = vcombine.high %v264, 0.0
        %v269 = vcombine.high %v173, 0.0
        %v271 = vunpack.c.l.s4 1983009808
        %v272 = vunpack.c.0.s8 %v271
        %v273 = vlaneseq
        %v274 = vshrl.u32 %v273, 7
        %v275 = vsub.s32 %v272, %v274
        %v276 = vrot.slane %v173, %v275
        %v278 = vunpack.c.l.s4 1983009808
        %v279 = vunpack.c.0.s8 %v278
        %v280 = vlaneseq
        %v281 = vshrl.u32 %v280, 7
        %v282 = vsub.s32 %v279, %v281
        %v283 = vrot.slane %v269, %v282
        %v284 = vcombine.high %v276, 0.0
        %v286 = vunpack.c.l.s4 1934713408
        %v287 = vunpack.c.0.s8 %v286
        %v288 = vlaneseq
        %v289 = vshrl.u32 %v288, 7
        %v290 = vsub.s32 %v287, %v289
        %v291 = vrot.slane %v276, %v290
        %v293 = vunpack.c.l.s4 1934713408
        %v294 = vunpack.c.0.s8 %v293
        %v295 = vlaneseq
        %v296 = vshrl.u32 %v295, 7
        %v297 = vsub.s32 %v294, %v296
        %v298 = vrot.slane %v284, %v297
        %v299 = vcombine.high %v283, 0.0
        %v301 = vunpack.c.l.s4 1934713408
        %v302 = vunpack.c.0.s8 %v301
        %v303 = vlaneseq
        %v304 = vshrl.u32 %v303, 7
        %v305 = vsub.s32 %v302, %v304
        %v306 = vrot.slane %v283, %v305
        %v308 = vunpack.c.l.s4 1934713408
        %v309 = vunpack.c.0.s8 %v308
        %v310 = vlaneseq
        %v311 = vshrl.u32 %v310, 7
        %v312 = vsub.s32 %v309, %v311
        %v313 = vrot.slane %v299, %v312
        %v314 = vcombine.high %v291, 0.0
        %v315 = vcombine.high %v298, 0.0
        %v316 = vcombine.high %v306, 0.0
        %v317 = vcombine.high %v313, 0.0
        %v318 = vcombine.high %v174, 0.0
        %v320 = vunpack.c.l.s4 1983009808
        %v321 = vunpack.c.0.s8 %v320
        %v322 = vlaneseq
        %v323 = vshrl.u32 %v322, 7
        %v324 = vsub.s32 %v321, %v323
        %v325 = vrot.slane %v174, %v324
        %v327 = vunpack.c.l.s4 1983009808
        %v328 = vunpack.c.0.s8 %v327
        %v329 = vlaneseq
        %v330 = vshrl.u32 %v329, 7
        %v331 = vsub.s32 %v328, %v330
        %v332 = vrot.slane %v318, %v331
        %v333 = vcombine.high %v325, 0.0
        %v335 = vunpack.c.l.s4 1934713408
        %v336 = vunpack.c.0.s8 %v335
        %v337 = vlaneseq
        %v338 = vshrl.u32 %v337, 7
        %v339 = vsub.s32 %v336, %v338
        %v340 = vrot.slane %v325, %v339
        %v342 = vunpack.c.l.s4 1934713408
        %v343 = vunpack.c.0.s8 %v342
        %v344 = vlaneseq
        %v345 = vshrl.u32 %v344, 7
        %v346 = vsub.s32 %v343, %v345
        %v347 = vrot.slane %v333, %v346
        %v348 = vcombine.high %v332, 0.0
        %v350 = vunpack.c.l.s4 1934713408
        %v351 = vunpack.c.0.s8 %v350
        %v352 = vlaneseq
        %v353 = vshrl.u32 %v352, 7
        %v354 = vsub.s32 %v351, %v353
        %v355 = vrot.slane %v332, %v354
        %v357 = vunpack.c.l.s4 1934713408
        %v358 = vunpack.c.0.s8 %v357
        %v359 = vlaneseq
        %v360 = vshrl.u32 %v359, 7
        %v361 = vsub.s32 %v358, %v360
        %v362 = vrot.slane %v348, %v361
        %v363 = vcombine.high %v340, 0.0
        %v364 = vcombine.high %v347, 0.0
        %v365 = vcombine.high %v355, 0.0
        %v366 = vcombine.high %v362, 0.0
        %v367 = vcombine.high %v175, 0.0
        %v369 = vunpack.c.l.s4 1983009808
        %v370 = vunpack.c.0.s8 %v369
        %v371 = vlaneseq
        %v372 = vshrl.u32 %v371, 7
        %v373 = vsub.s32 %v370, %v372
        %v374 = vrot.slane %v175, %v373
        %v376 = vunpack.c.l.s4 1983009808
        %v377 = vunpack.c.0.s8 %v376
        %v378 = vlaneseq
        %v379 = vshrl.u32 %v378, 7
        %v380 = vsub.s32 %v377, %v379
        %v381 = vrot.slane %v367, %v380
        %v382 = vcombine.high %v374, 0.0
        %v384 = vunpack.c.l.s4 1934713408
        %v385 = vunpack.c.0.s8 %v384
        %v386 = vlaneseq
        %v387 = vshrl.u32 %v386, 7
        %v388 = vsub.s32 %v385, %v387
        %v389 = vrot.slane %v374, %v388
        %v391 = vunpack.c.l.s4 1934713408
        %v392 = vunpack.c.0.s8 %v391
        %v393 = vlaneseq
        %v394 = vshrl.u32 %v393, 7
        %v395 = vsub.s32 %v392, %v394
        %v396 = vrot.slane %v382, %v395
        %v397 = vcombine.high %v381, 0.0
        %v399 = vunpack.c.l.s4 1934713408
        %v400 = vunpack.c.0.s8 %v399
        %v401 = vlaneseq
        %v402 = vshrl.u32 %v401, 7
        %v403 = vsub.s32 %v400, %v402
        %v404 = vrot.slane %v381, %v403
        %v406 = vunpack.c.l.s4 1934713408
        %v407 = vunpack.c.0.s8 %v406
        %v408 = vlaneseq
        %v409 = vshrl.u32 %v408, 7
        %v410 = vsub.s32 %v407, %v409
        %v411 = vrot.slane %v397, %v410
        %v412 = vcombine.high %v389, 0.0
        %v413 = vcombine.high %v396, 0.0
        %v414 = vcombine.high %v404, 0.0
        %v415 = vcombine.high %v411, 0.0
        %v416 = vcombine.high %v176, 0.0
        %v418 = vunpack.c.l.s4 1983009808
        %v419 = vunpack.c.0.s8 %v418
        %v420 = vlaneseq
        %v421 = vshrl.u32 %v420, 7
        %v422 = vsub.s32 %v419, %v421
        %v423 = vrot.slane %v176, %v422
        %v425 = vunpack.c.l.s4 1983009808
        %v426 = vunpack.c.0.s8 %v425
        %v427 = vlaneseq
        %v428 = vshrl.u32 %v427, 7
        %v429 = vsub.s32 %v426, %v428
        %v430 = vrot.slane %v416, %v429
        %v431 = vcombine.high %v423, 0.0
        %v433 = vunpack.c.l.s4 1934713408
        %v434 = vunpack.c.0.s8 %v433
        %v435 = vlaneseq
        %v436 = vshrl.u32 %v435, 7
        %v437 = vsub.s32 %v434, %v436
        %v438 = vrot.slane %v423, %v437
        %v440 = vunpack.c.l.s4 1934713408
        %v441 = vunpack.c.0.s8 %v440
        %v442 = vlaneseq
        %v443 = vshrl.u32 %v442, 7
        %v444 = vsub.s32 %v441, %v443
        %v445 = vrot.slane %v431, %v444
        %v446 = vcombine.high %v430, 0.0
        %v448 = vunpack.c.l.s4 1934713408
        %v449 = vunpack.c.0.s8 %v448
        %v450 = vlaneseq
        %v451 = vshrl.u32 %v450, 7
        %v452 = vsub.s32 %v449, %v451
        %v453 = vrot.slane %v430, %v452
        %v455 = vunpack.c.l.s4 1934713408
        %v456 = vunpack.c.0.s8 %v455
        %v457 = vlaneseq
        %v458 = vshrl.u32 %v457, 7
        %v459 = vsub.s32 %v456, %v458
        %v460 = vrot.slane %v446, %v459
        %v461 = vcombine.high %v438, 0.0
        %v462 = vcombine.high %v445, 0.0
        %v463 = vcombine.high %v453, 0.0
        %v464 = vcombine.high %v460, 0.0
        %v465 = vcombine.high %v177, 0.0
        %v467 = vunpack.c.l.s4 1983009808
        %v468 = vunpack.c.0.s8 %v467
        %v469 = vlaneseq
        %v470 = vshrl.u32 %v469, 7
        %v471 = vsub.s32 %v468, %v470
        %v472 = vrot.slane %v177, %v471
        %v474 = vunpack.c.l.s4 1983009808
        %v475 = vunpack.c.0.s8 %v474
        %v476 = vlaneseq
        %v477 = vshrl.u32 %v476, 7
        %v478 = vsub.s32 %v475, %v477
        %v479 = vrot.slane %v465, %v478
        %v480 = vcombine.high %v472, 0.0
        %v482 = vunpack.c.l.s4 1934713408
        %v483 = vunpack.c.0.s8 %v482
        %v484 = vlaneseq
        %v485 = vshrl.u32 %v484, 7
        %v486 = vsub.s32 %v483, %v485
        %v487 = vrot.slane %v472, %v486
        %v489 = vunpack.c.l.s4 1934713408
        %v490 = vunpack.c.0.s8 %v489
        %v491 = vlaneseq
        %v492 = vshrl.u32 %v491, 7
        %v493 = vsub.s32 %v490, %v492
        %v494 = vrot.slane %v480, %v493
        %v495 = vcombine.high %v479, 0.0
        %v497 = vunpack.c.l.s4 1934713408
        %v498 = vunpack.c.0.s8 %v497
        %v499 = vlaneseq
        %v500 = vshrl.u32 %v499, 7
        %v501 = vsub.s32 %v498, %v500
        %v502 = vrot.slane %v479, %v501
        %v504 = vunpack.c.l.s4 1934713408
        %v505 = vunpack.c.0.s8 %v504
        %v506 = vlaneseq
        %v507 = vshrl.u32 %v506, 7
        %v508 = vsub.s32 %v505, %v507
        %v509 = vrot.slane %v495, %v508
        %v510 = vcombine.high %v487, 0.0
        %v511 = vcombine.high %v494, 0.0
        %v512 = vcombine.high %v502, 0.0
        %v513 = vcombine.high %v509, 0.0
        %v514 = vcombine.high %v178, 0.0
        %v516 = vunpack.c.l.s4 1983009808
        %v517 = vunpack.c.0.s8 %v516
        %v518 = vlaneseq
        %v519 = vshrl.u32 %v518, 7
        %v520 = vsub.s32 %v517, %v519
        %v521 = vrot.slane %v178, %v520
        %v523 = vunpack.c.l.s4 1983009808
        %v524 = vunpack.c.0.s8 %v523
        %v525 = vlaneseq
        %v526 = vshrl.u32 %v525, 7
        %v527 = vsub.s32 %v524, %v526
        %v528 = vrot.slane %v514, %v527
        %v529 = vcombine.high %v521, 0.0
        %v531 = vunpack.c.l.s4 1934713408
        %v532 = vunpack.c.0.s8 %v531
        %v533 = vlaneseq
        %v534 = vshrl.u32 %v533, 7
        %v535 = vsub.s32 %v532, %v534
        %v536 = vrot.slane %v521, %v535
        %v538 = vunpack.c.l.s4 1934713408
        %v539 = vunpack.c.0.s8 %v538
        %v540 = vlaneseq
        %v541 = vshrl.u32 %v540, 7
        %v542 = vsub.s32 %v539, %v541
        %v543 = vrot.slane %v529, %v542
        %v544 = vcombine.high %v528, 0.0
        %v546 = vunpack.c.l.s4 1934713408
        %v547 = vunpack.c.0.s8 %v546
        %v548 = vlaneseq
        %v549 = vshrl.u32 %v548, 7
        %v550 = vsub.s32 %v547, %v549
        %v551 = vrot.slane %v528, %v550
        %v553 = vunpack.c.l.s4 1934713408
        %v554 = vunpack.c.0.s8 %v553
        %v555 = vlaneseq
        %v556 = vshrl.u32 %v555, 7
        %v557 = vsub.s32 %v554, %v556
        %v558 = vrot.slane %v544, %v557
        %v559 = vcombine.high %v536, 0.0
        %v560 = vcombine.high %v543, 0.0
        %v561 = vcombine.high %v551, 0.0
        %v562 = vcombine.high %v558, 0.0
        %v563 = vcombine.high %v179, 0.0
        %v565 = vunpack.c.l.s4 1983009808
        %v566 = vunpack.c.0.s8 %v565
        %v567 = vlaneseq
        %v568 = vshrl.u32 %v567, 7
        %v569 = vsub.s32 %v566, %v568
        %v570 = vrot.slane %v179, %v569
        %v572 = vunpack.c.l.s4 1983009808
        %v573 = vunpack.c.0.s8 %v572
        %v574 = vlaneseq
        %v575 = vshrl.u32 %v574, 7
        %v576 = vsub.s32 %v573, %v575
        %v577 = vrot.slane %v563, %v576
        %v578 = vcombine.high %v570, 0.0
        %v580 = vunpack.c.l.s4 1934713408
        %v581 = vunpack.c.0.s8 %v580
        %v582 = vlaneseq
        %v583 = vshrl.u32 %v582, 7
        %v584 = vsub.s32 %v581, %v583
        %v585 = vrot.slane %v570, %v584
        %v587 = vunpack.c.l.s4 1934713408
        %v588 = vunpack.c.0.s8 %v587
        %v589 = vlaneseq
        %v590 = vshrl.u32 %v589, 7
        %v591 = vsub.s32 %v588, %v590
        %v592 = vrot.slane %v578, %v591
        %v593 = vcombine.high %v577, 0.0
        %v595 = vunpack.c.l.s4 1934713408
        %v596 = vunpack.c.0.s8 %v595
        %v597 = vlaneseq
        %v598 = vshrl.u32 %v597, 7
        %v599 = vsub.s32 %v596, %v598
        %v600 = vrot.slane %v577, %v599
        %v602 = vunpack.c.l.s4 1934713408
        %v603 = vunpack.c.0.s8 %v602
        %v604 = vlaneseq
        %v605 = vshrl.u32 %v604, 7
        %v606 = vsub.s32 %v603, %v605
        %v607 = vrot.slane %v593, %v606
        %v608 = vcombine.high %v585, 0.0
        %v609 = vcombine.high %v592, 0.0
        %v610 = vcombine.high %v600, 0.0
        %v611 = vcombine.high %v607, 0.0
        %v612 = vcombine.high %v180, 0.0
        %v614 = vunpack.c.l.s4 1983009808
        %v615 = vunpack.c.0.s8 %v614
        %v616 = vlaneseq
        %v617 = vshrl.u32 %v616, 7
        %v618 = vsub.s32 %v615, %v617
        %v619 = vrot.slane %v180, %v618
        %v621 = vunpack.c.l.s4 1983009808
        %v622 = vunpack.c.0.s8 %v621
        %v623 = vlaneseq
        %v624 = vshrl.u32 %v623, 7
        %v625 = vsub.s32 %v622, %v624
        %v626 = vrot.slane %v612, %v625
        %v627 = vcombine.high %v619, 0.0
        %v629 = vunpack.c.l.s4 1934713408
        %v630 = vunpack.c.0.s8 %v629
        %v631 = vlaneseq
        %v632 = vshrl.u32 %v631, 7
        %v633 = vsub.s32 %v630, %v632
        %v634 = vrot.slane %v619, %v633
        %v636 = vunpack.c.l.s4 1934713408
        %v637 = vunpack.c.0.s8 %v636
        %v638 = vlaneseq
        %v639 = vshrl.u32 %v638, 7
        %v640 = vsub.s32 %v637, %v639
        %v641 = vrot.slane %v627, %v640
        %v642 = vcombine.high %v626, 0.0
        %v644 = vunpack.c.l.s4 1934713408
        %v645 = vunpack.c.0.s8 %v644
        %v646 = vlaneseq
        %v647 = vshrl.u32 %v646, 7
        %v648 = vsub.s32 %v645, %v647
        %v649 = vrot.slane %v626, %v648
        %v651 = vunpack.c.l.s4 1934713408
        %v652 = vunpack.c.0.s8 %v651
        %v653 = vlaneseq
        %v654 = vshrl.u32 %v653, 7
        %v655 = vsub.s32 %v652, %v654
        %v656 = vrot.slane %v642, %v655
        %v657 = vcombine.high %v634, 0.0
        %v658 = vcombine.high %v641, 0.0
        %v659 = vcombine.high %v649, 0.0
        %v660 = vcombine.high %v656, 0.0
        %v661 = vcombine.high %v181, 0.0
        %v663 = vunpack.c.l.s4 1983009808
        %v664 = vunpack.c.0.s8 %v663
        %v665 = vlaneseq
        %v666 = vshrl.u32 %v665, 7
        %v667 = vsub.s32 %v664, %v666
        %v668 = vrot.slane %v181, %v667
        %v670 = vunpack.c.l.s4 1983009808
        %v671 = vunpack.c.0.s8 %v670
        %v672 = vlaneseq
        %v673 = vshrl.u32 %v672, 7
        %v674 = vsub.s32 %v671, %v673
        %v675 = vrot.slane %v661, %v674
        %v676 = vcombine.high %v668, 0.0
        %v678 = vunpack.c.l.s4 1934713408
        %v679 = vunpack.c.0.s8 %v678
        %v680 = vlaneseq
        %v681 = vshrl.u32 %v680, 7
        %v682 = vsub.s32 %v679, %v681
        %v683 = vrot.slane %v668, %v682
        %v685 = vunpack.c.l.s4 1934713408
        %v686 = vunpack.c.0.s8 %v685
        %v687 = vlaneseq
        %v688 = vshrl.u32 %v687, 7
        %v689 = vsub.s32 %v686, %v688
        %v690 = vrot.slane %v676, %v689
        %v691 = vcombine.high %v675, 0.0
        %v693 = vunpack.c.l.s4 1934713408
        %v694 = vunpack.c.0.s8 %v693
        %v695 = vlaneseq
        %v696 = vshrl.u32 %v695, 7
        %v697 = vsub.s32 %v694, %v696
        %v698 = vrot.slane %v675, %v697
        %v700 = vunpack.c.l.s4 1934713408
        %v701 = vunpack.c.0.s8 %v700
        %v702 = vlaneseq
        %v703 = vshrl.u32 %v702, 7
        %v704 = vsub.s32 %v701, %v703
        %v705 = vrot.slane %v691, %v704
        %v706 = vcombine.high %v683, 0.0
        %v707 = vcombine.high %v690, 0.0
        %v708 = vcombine.high %v698, 0.0
        %v709 = vcombine.high %v705, 0.0
        %v710 = vcombine.high %v182, 0.0
        %v712 = vunpack.c.l.s4 1983009808
        %v713 = vunpack.c.0.s8 %v712
        %v714 = vlaneseq
        %v715 = vshrl.u32 %v714, 7
        %v716 = vsub.s32 %v713, %v715
        %v717 = vrot.slane %v182, %v716
        %v719 = vunpack.c.l.s4 1983009808
        %v720 = vunpack.c.0.s8 %v719
        %v721 = vlaneseq
        %v722 = vshrl.u32 %v721, 7
        %v723 = vsub.s32 %v720, %v722
        %v724 = vrot.slane %v710, %v723
        %v725 = vcombine.high %v717, 0.0
        %v727 = vunpack.c.l.s4 1934713408
        %v728 = vunpack.c.0.s8 %v727
        %v729 = vlaneseq
        %v730 = vshrl.u32 %v729, 7
        %v731 = vsub.s32 %v728, %v730
        %v732 = vrot.slane %v717, %v731
        %v734 = vunpack.c.l.s4 1934713408
        %v735 = vunpack.c.0.s8 %v734
        %v736 = vlaneseq
        %v737 = vshrl.u32 %v736, 7
        %v738 = vsub.s32 %v735, %v737
        %v739 = vrot.slane %v725, %v738
        %v740 = vcombine.high %v724, 0.0
        %v742 = vunpack.c.l.s4 1934713408
        %v743 = vunpack.c.0.s8 %v742
        %v744 = vlaneseq
        %v745 = vshrl.u32 %v744, 7
        %v746 = vsub.s32 %v743, %v745
        %v747 = vrot.slane %v724, %v746
        %v749 = vunpack.c.l.s4 1934713408
        %v750 = vunpack.c.0.s8 %v749
        %v751 = vlaneseq
        %v752 = vshrl.u32 %v751, 7
        %v753 = vsub.s32 %v750, %v752
        %v754 = vrot.slane %v740, %v753
        %v755 = vcombine.high %v732, 0.0
        %v756 = vcombine.high %v739, 0.0
        %v757 = vcombine.high %v747, 0.0
        %v758 = vcombine.high %v754, 0.0
        %v759 = vcombine.high %v183, 0.0
        %v761 = vunpack.c.l.s4 1983009808
        %v762 = vunpack.c.0.s8 %v761
        %v763 = vlaneseq
        %v764 = vshrl.u32 %v763, 7
        %v765 = vsub.s32 %v762, %v764
        %v766 = vrot.slane %v183, %v765
        %v768 = vunpack.c.l.s4 1983009808
        %v769 = vunpack.c.0.s8 %v768
        %v770 = vlaneseq
        %v771 = vshrl.u32 %v770, 7
        %v772 = vsub.s32 %v769, %v771
        %v773 = vrot.slane %v759, %v772
        %v774 = vcombine.high %v766, 0.0
        %v776 = vunpack.c.l.s4 1934713408
        %v777 = vunpack.c.0.s8 %v776
        %v778 = vlaneseq
        %v779 = vshrl.u32 %v778, 7
        %v780 = vsub.s32 %v777, %v779
        %v781 = vrot.slane %v766, %v780
        %v783 = vunpack.c.l.s4 1934713408
        %v784 = vunpack.c.0.s8 %v783
        %v785 = vlaneseq
        %v786 = vshrl.u32 %v785, 7
        %v787 = vsub.s32 %v784, %v786
        %v788 = vrot.slane %v774, %v787
        %v789 = vcombine.high %v773, 0.0
        %v791 = vunpack.c.l.s4 1934713408
        %v792 = vunpack.c.0.s8 %v791
        %v793 = vlaneseq
        %v794 = vshrl.u32 %v793, 7
        %v795 = vsub.s32 %v792, %v794
        %v796 = vrot.slane %v773, %v795
        %v798 = vunpack.c.l.s4 1934713408
        %v799 = vunpack.c.0.s8 %v798
        %v800 = vlaneseq
        %v801 = vshrl.u32 %v800, 7
        %v802 = vsub.s32 %v799, %v801
        %v803 = vrot.slane %v789, %v802
        %v804 = vcombine.high %v781, 0.0
        %v805 = vcombine.high %v788, 0.0
        %v806 = vcombine.high %v796, 0.0
        %v807 = vcombine.high %v803, 0.0
        %v808 = vcombine.high %v184, 0.0
        %v810 = vunpack.c.l.s4 1983009808
        %v811 = vunpack.c.0.s8 %v810
        %v812 = vlaneseq
        %v813 = vshrl.u32 %v812, 7
        %v814 = vsub.s32 %v811, %v813
        %v815 = vrot.slane %v184, %v814
        %v817 = vunpack.c.l.s4 1983009808
        %v818 = vunpack.c.0.s8 %v817
        %v819 = vlaneseq
        %v820 = vshrl.u32 %v819, 7
        %v821 = vsub.s32 %v818, %v820
        %v822 = vrot.slane %v808, %v821
        %v823 = vcombine.high %v815, 0.0
        %v825 = vunpack.c.l.s4 1934713408
        %v826 = vunpack.c.0.s8 %v825
        %v827 = vlaneseq
        %v828 = vshrl.u32 %v827, 7
        %v829 = vsub.s32 %v826, %v828
        %v830 = vrot.slane %v815, %v829
        %v832 = vunpack.c.l.s4 1934713408
        %v833 = vunpack.c.0.s8 %v832
        %v834 = vlaneseq
        %v835 = vshrl.u32 %v834, 7
        %v836 = vsub.s32 %v833, %v835
        %v837 = vrot.slane %v823, %v836
        %v838 = vcombine.high %v822, 0.0
        %v840 = vunpack.c.l.s4 1934713408
        %v841 = vunpack.c.0.s8 %v840
        %v842 = vlaneseq
        %v843 = vshrl.u32 %v842, 7
        %v844 = vsub.s32 %v841, %v843
        %v845 = vrot.slane %v822, %v844
        %v847 = vunpack.c.l.s4 1934713408
        %v848 = vunpack.c.0.s8 %v847
        %v849 = vlaneseq
        %v850 = vshrl.u32 %v849, 7
        %v851 = vsub.s32 %v848, %v850
        %v852 = vrot.slane %v838, %v851
        %v853 = vcombine.high %v830, 0.0
        %v854 = vcombine.high %v837, 0.0
        %v855 = vcombine.high %v845, 0.0
        %v856 = vcombine.high %v852, 0.0
        %v857 = vcombine.high %v185, 0.0
        %v859 = vunpack.c.l.s4 1983009808
        %v860 = vunpack.c.0.s8 %v859
        %v861 = vlaneseq
        %v862 = vshrl.u32 %v861, 7
        %v863 = vsub.s32 %v860, %v862
        %v864 = vrot.slane %v185, %v863
        %v866 = vunpack.c.l.s4 1983009808
        %v867 = vunpack.c.0.s8 %v866
        %v868 = vlaneseq
        %v869 = vshrl.u32 %v868, 7
        %v870 = vsub.s32 %v867, %v869
        %v871 = vrot.slane %v857, %v870
        %v872 = vcombine.high %v864, 0.0
        %v874 = vunpack.c.l.s4 1934713408
        %v875 = vunpack.c.0.s8 %v874
        %v876 = vlaneseq
        %v877 = vshrl.u32 %v876, 7
        %v878 = vsub.s32 %v875, %v877
        %v879 = vrot.slane %v864, %v878
        %v881 = vunpack.c.l.s4 1934713408
        %v882 = vunpack.c.0.s8 %v881
        %v883 = vlaneseq
        %v884 = vshrl.u32 %v883, 7
        %v885 = vsub.s32 %v882, %v884
        %v886 = vrot.slane %v872, %v885
        %v887 = vcombine.high %v871, 0.0
        %v889 = vunpack.c.l.s4 1934713408
        %v890 = vunpack.c.0.s8 %v889
        %v891 = vlaneseq
        %v892 = vshrl.u32 %v891, 7
        %v893 = vsub.s32 %v890, %v892
        %v894 = vrot.slane %v871, %v893
        %v896 = vunpack.c.l.s4 1934713408
        %v897 = vunpack.c.0.s8 %v896
        %v898 = vlaneseq
        %v899 = vshrl.u32 %v898, 7
        %v900 = vsub.s32 %v897, %v899
        %v901 = vrot.slane %v887, %v900
        %v902 = vcombine.high %v879, 0.0
        %v903 = vcombine.high %v886, 0.0
        %v904 = vcombine.high %v894, 0.0
        %v905 = vcombine.high %v901, 0.0
        %v906 = vcombine.high %v186, 0.0
        %v908 = vunpack.c.l.s4 1983009808
        %v909 = vunpack.c.0.s8 %v908
        %v910 = vlaneseq
        %v911 = vshrl.u32 %v910, 7
        %v912 = vsub.s32 %v909, %v911
        %v913 = vrot.slane %v186, %v912
        %v915 = vunpack.c.l.s4 1983009808
        %v916 = vunpack.c.0.s8 %v915
        %v917 = vlaneseq
        %v918 = vshrl.u32 %v917, 7
        %v919 = vsub.s32 %v916, %v918
        %v920 = vrot.slane %v906, %v919
        %v921 = vcombine.high %v913, 0.0
        %v923 = vunpack.c.l.s4 1934713408
        %v924 = vunpack.c.0.s8 %v923
        %v925 = vlaneseq
        %v926 = vshrl.u32 %v925, 7
        %v927 = vsub.s32 %v924, %v926
        %v928 = vrot.slane %v913, %v927
        %v930 = vunpack.c.l.s4 1934713408
        %v931 = vunpack.c.0.s8 %v930
        %v932 = vlaneseq
        %v933 = vshrl.u32 %v932, 7
        %v934 = vsub.s32 %v931, %v933
        %v935 = vrot.slane %v921, %v934
        %v936 = vcombine.high %v920, 0.0
        %v938 = vunpack.c.l.s4 1934713408
        %v939 = vunpack.c.0.s8 %v938
        %v940 = vlaneseq
        %v941 = vshrl.u32 %v940, 7
        %v942 = vsub.s32 %v939, %v941
        %v943 = vrot.slane %v920, %v942
        %v945 = vunpack.c.l.s4 1934713408
        %v946 = vunpack.c.0.s8 %v945
        %v947 = vlaneseq
        %v948 = vshrl.u32 %v947, 7
        %v949 = vsub.s32 %v946, %v948
        %v950 = vrot.slane %v936, %v949
        %v951 = vcombine.high %v928, 0.0
        %v952 = vcombine.high %v935, 0.0
        %v953 = vcombine.high %v943, 0.0
        %v954 = vcombine.high %v950, 0.0
        %v955 = vcombine.high %v187, 0.0
        %v957 = vunpack.c.l.s4 1983009808
        %v958 = vunpack.c.0.s8 %v957
        %v959 = vlaneseq
        %v960 = vshrl.u32 %v959, 7
        %v961 = vsub.s32 %v958, %v960
        %v962 = vrot.slane %v187, %v961
        %v964 = vunpack.c.l.s4 1983009808
        %v965 = vunpack.c.0.s8 %v964
        %v966 = vlaneseq
        %v967 = vshrl.u32 %v966, 7
        %v968 = vsub.s32 %v965, %v967
        %v969 = vrot.slane %v955, %v968
        %v970 = vcombine.high %v962, 0.0
        %v972 = vunpack.c.l.s4 1934713408
        %v973 = vunpack.c.0.s8 %v972
        %v974 = vlaneseq
        %v975 = vshrl.u32 %v974, 7
        %v976 = vsub.s32 %v973, %v975
        %v977 = vrot.slane %v962, %v976
        %v979 = vunpack.c.l.s4 1934713408
        %v980 = vunpack.c.0.s8 %v979
        %v981 = vlaneseq
        %v982 = vshrl.u32 %v981, 7
        %v983 = vsub.s32 %v980, %v982
        %v984 = vrot.slane %v970, %v983
        %v985 = vcombine.high %v969, 0.0
        %v987 = vunpack.c.l.s4 1934713408
        %v988 = vunpack.c.0.s8 %v987
        %v989 = vlaneseq
        %v990 = vshrl.u32 %v989, 7
        %v991 = vsub.s32 %v988, %v990
        %v992 = vrot.slane %v969, %v991
        %v994 = vunpack.c.l.s4 1934713408
        %v995 = vunpack.c.0.s8 %v994
        %v996 = vlaneseq
        %v997 = vshrl.u32 %v996, 7
        %v998 = vsub.s32 %v995, %v997
        %v999 = vrot.slane %v985, %v998
        %v1000 = vcombine.high %v977, 0.0
        %v1001 = vcombine.high %v984, 0.0
        %v1002 = vcombine.high %v992, 0.0
        %v1003 = vcombine.high %v999, 0.0
        %v1004 = vcombine.high %v204, 0.0
        %v1006 = vunpack.c.l.s4 1983009808
        %v1007 = vunpack.c.0.s8 %v1006
        %v1008 = vlaneseq
        %v1009 = vshrl.u32 %v1008, 7
        %v1010 = vsub.s32 %v1007, %v1009
        %v1011 = vrot.slane %v204, %v1010
        %v1013 = vunpack.c.l.s4 1983009808
        %v1014 = vunpack.c.0.s8 %v1013
        %v1015 = vlaneseq
        %v1016 = vshrl.u32 %v1015, 7
        %v1017 = vsub.s32 %v1014, %v1016
        %v1018 = vrot.slane %v1004, %v1017
        %v1019 = vcombine.high %v1011, 0.0
        %v1021 = vunpack.c.l.s4 1934713408
        %v1022 = vunpack.c.0.s8 %v1021
        %v1023 = vlaneseq
        %v1024 = vshrl.u32 %v1023, 7
        %v1025 = vsub.s32 %v1022, %v1024
        %v1026 = vrot.slane %v1011, %v1025
        %v1028 = vunpack.c.l.s4 1934713408
        %v1029 = vunpack.c.0.s8 %v1028
        %v1030 = vlaneseq
        %v1031 = vshrl.u32 %v1030, 7
        %v1032 = vsub.s32 %v1029, %v1031
        %v1033 = vrot.slane %v1019, %v1032
        %v1034 = vcombine.high %v1018, 0.0
        %v1036 = vunpack.c.l.s4 1934713408
        %v1037 = vunpack.c.0.s8 %v1036
        %v1038 = vlaneseq
        %v1039 = vshrl.u32 %v1038, 7
        %v1040 = vsub.s32 %v1037, %v1039
        %v1041 = vrot.slane %v1018, %v1040
        %v1043 = vunpack.c.l.s4 1934713408
        %v1044 = vunpack.c.0.s8 %v1043
        %v1045 = vlaneseq
        %v1046 = vshrl.u32 %v1045, 7
        %v1047 = vsub.s32 %v1044, %v1046
        %v1048 = vrot.slane %v1034, %v1047
        %v1049 = vcombine.high %v1026, 0.0
        %v1050 = vcombine.high %v1033, 0.0
        %v1051 = vcombine.high %v1041, 0.0
        %v1052 = vcombine.high %v1048, 0.0
        %v1053 = vcombine.high %v205, 0.0
        %v1055 = vunpack.c.l.s4 1983009808
        %v1056 = vunpack.c.0.s8 %v1055
        %v1057 = vlaneseq
        %v1058 = vshrl.u32 %v1057, 7
        %v1059 = vsub.s32 %v1056, %v1058
        %v1060 = vrot.slane %v205, %v1059
        %v1062 = vunpack.c.l.s4 1983009808
        %v1063 = vunpack.c.0.s8 %v1062
        %v1064 = vlaneseq
        %v1065 = vshrl.u32 %v1064, 7
        %v1066 = vsub.s32 %v1063, %v1065
        %v1067 = vrot.slane %v1053, %v1066
        %v1068 = vcombine.high %v1060, 0.0
        %v1070 = vunpack.c.l.s4 1934713408
        %v1071 = vunpack.c.0.s8 %v1070
        %v1072 = vlaneseq
        %v1073 = vshrl.u32 %v1072, 7
        %v1074 = vsub.s32 %v1071, %v1073
        %v1075 = vrot.slane %v1060, %v1074
        %v1077 = vunpack.c.l.s4 1934713408
        %v1078 = vunpack.c.0.s8 %v1077
        %v1079 = vlaneseq
        %v1080 = vshrl.u32 %v1079, 7
        %v1081 = vsub.s32 %v1078, %v1080
        %v1082 = vrot.slane %v1068, %v1081
        %v1083 = vcombine.high %v1067, 0.0
        %v1085 = vunpack.c.l.s4 1934713408
        %v1086 = vunpack.c.0.s8 %v1085
        %v1087 = vlaneseq
        %v1088 = vshrl.u32 %v1087, 7
        %v1089 = vsub.s32 %v1086, %v1088
        %v1090 = vrot.slane %v1067, %v1089
        %v1092 = vunpack.c.l.s4 1934713408
        %v1093 = vunpack.c.0.s8 %v1092
        %v1094 = vlaneseq
        %v1095 = vshrl.u32 %v1094, 7
        %v1096 = vsub.s32 %v1093, %v1095
        %v1097 = vrot.slane %v1083, %v1096
        %v1098 = vcombine.high %v1075, 0.0
        %v1099 = vcombine.high %v1082, 0.0
        %v1100 = vcombine.high %v1090, 0.0
        %v1101 = vcombine.high %v1097, 0.0
        %v1102 = vcombine.high %v206, 0.0
        %v1104 = vunpack.c.l.s4 1983009808
        %v1105 = vunpack.c.0.s8 %v1104
        %v1106 = vlaneseq
        %v1107 = vshrl.u32 %v1106, 7
        %v1108 = vsub.s32 %v1105, %v1107
        %v1109 = vrot.slane %v206, %v1108
        %v1111 = vunpack.c.l.s4 1983009808
        %v1112 = vunpack.c.0.s8 %v1111
        %v1113 = vlaneseq
        %v1114 = vshrl.u32 %v1113, 7
        %v1115 = vsub.s32 %v1112, %v1114
        %v1116 = vrot.slane %v1102, %v1115
        %v1117 = vcombine.high %v1109, 0.0
        %v1119 = vunpack.c.l.s4 1934713408
        %v1120 = vunpack.c.0.s8 %v1119
        %v1121 = vlaneseq
        %v1122 = vshrl.u32 %v1121, 7
        %v1123 = vsub.s32 %v1120, %v1122
        %v1124 = vrot.slane %v1109, %v1123
        %v1126 = vunpack.c.l.s4 1934713408
        %v1127 = vunpack.c.0.s8 %v1126
        %v1128 = vlaneseq
        %v1129 = vshrl.u32 %v1128, 7
        %v1130 = vsub.s32 %v1127, %v1129
        %v1131 = vrot.slane %v1117, %v1130
        %v1132 = vcombine.high %v1116, 0.0
        %v1134 = vunpack.c.l.s4 1934713408
        %v1135 = vunpack.c.0.s8 %v1134
        %v1136 = vlaneseq
        %v1137 = vshrl.u32 %v1136, 7
        %v1138 = vsub.s32 %v1135, %v1137
        %v1139 = vrot.slane %v1116, %v1138
        %v1141 = vunpack.c.l.s4 1934713408
        %v1142 = vunpack.c.0.s8 %v1141
        %v1143 = vlaneseq
        %v1144 = vshrl.u32 %v1143, 7
        %v1145 = vsub.s32 %v1142, %v1144
        %v1146 = vrot.slane %v1132, %v1145
        %v1147 = vcombine.high %v1124, 0.0
        %v1148 = vcombine.high %v1131, 0.0
        %v1149 = vcombine.high %v1139, 0.0
        %v1150 = vcombine.high %v1146, 0.0
        %v1151 = vcombine.high %v207, 0.0
        %v1153 = vunpack.c.l.s4 1983009808
        %v1154 = vunpack.c.0.s8 %v1153
        %v1155 = vlaneseq
        %v1156 = vshrl.u32 %v1155, 7
        %v1157 = vsub.s32 %v1154, %v1156
        %v1158 = vrot.slane %v207, %v1157
        %v1160 = vunpack.c.l.s4 1983009808
        %v1161 = vunpack.c.0.s8 %v1160
        %v1162 = vlaneseq
        %v1163 = vshrl.u32 %v1162, 7
        %v1164 = vsub.s32 %v1161, %v1163
        %v1165 = vrot.slane %v1151, %v1164
        %v1166 = vcombine.high %v1158, 0.0
        %v1168 = vunpack.c.l.s4 1934713408
        %v1169 = vunpack.c.0.s8 %v1168
        %v1170 = vlaneseq
        %v1171 = vshrl.u32 %v1170, 7
        %v1172 = vsub.s32 %v1169, %v1171
        %v1173 = vrot.slane %v1158, %v1172
        %v1175 = vunpack.c.l.s4 1934713408
        %v1176 = vunpack.c.0.s8 %v1175
        %v1177 = vlaneseq
        %v1178 = vshrl.u32 %v1177, 7
        %v1179 = vsub.s32 %v1176, %v1178
        %v1180 = vrot.slane %v1166, %v1179
        %v1181 = vcombine.high %v1165, 0.0
        %v1183 = vunpack.c.l.s4 1934713408
        %v1184 = vunpack.c.0.s8 %v1183
        %v1185 = vlaneseq
        %v1186 = vshrl.u32 %v1185, 7
        %v1187 = vsub.s32 %v1184, %v1186
        %v1188 = vrot.slane %v1165, %v1187
        %v1190 = vunpack.c.l.s4 1934713408
        %v1191 = vunpack.c.0.s8 %v1190
        %v1192 = vlaneseq
        %v1193 = vshrl.u32 %v1192, 7
        %v1194 = vsub.s32 %v1191, %v1193
        %v1195 = vrot.slane %v1181, %v1194
        %v1196 = vcombine.high %v1173, 0.0
        %v1197 = vcombine.high %v1180, 0.0
        %v1198 = vcombine.high %v1188, 0.0
        %v1199 = vcombine.high %v1195, 0.0
        %v1200 = vcombine.high %v208, 0.0
        %v1202 = vunpack.c.l.s4 1983009808
        %v1203 = vunpack.c.0.s8 %v1202
        %v1204 = vlaneseq
        %v1205 = vshrl.u32 %v1204, 7
        %v1206 = vsub.s32 %v1203, %v1205
        %v1207 = vrot.slane %v208, %v1206
        %v1209 = vunpack.c.l.s4 1983009808
        %v1210 = vunpack.c.0.s8 %v1209
        %v1211 = vlaneseq
        %v1212 = vshrl.u32 %v1211, 7
        %v1213 = vsub.s32 %v1210, %v1212
        %v1214 = vrot.slane %v1200, %v1213
        %v1215 = vcombine.high %v1207, 0.0
        %v1217 = vunpack.c.l.s4 1934713408
        %v1218 = vunpack.c.0.s8 %v1217
        %v1219 = vlaneseq
        %v1220 = vshrl.u32 %v1219, 7
        %v1221 = vsub.s32 %v1218, %v1220
        %v1222 = vrot.slane %v1207, %v1221
        %v1224 = vunpack.c.l.s4 1934713408
        %v1225 = vunpack.c.0.s8 %v1224
        %v1226 = vlaneseq
        %v1227 = vshrl.u32 %v1226, 7
        %v1228 = vsub.s32 %v1225, %v1227
        %v1229 = vrot.slane %v1215, %v1228
        %v1230 = vcombine.high %v1214, 0.0
        %v1232 = vunpack.c.l.s4 1934713408
        %v1233 = vunpack.c.0.s8 %v1232
        %v1234 = vlaneseq
        %v1235 = vshrl.u32 %v1234, 7
        %v1236 = vsub.s32 %v1233, %v1235
        %v1237 = vrot.slane %v1214, %v1236
        %v1239 = vunpack.c.l.s4 1934713408
        %v1240 = vunpack.c.0.s8 %v1239
        %v1241 = vlaneseq
        %v1242 = vshrl.u32 %v1241, 7
        %v1243 = vsub.s32 %v1240, %v1242
        %v1244 = vrot.slane %v1230, %v1243
        %v1245 = vcombine.high %v1222, 0.0
        %v1246 = vcombine.high %v1229, 0.0
        %v1247 = vcombine.high %v1237, 0.0
        %v1248 = vcombine.high %v1244, 0.0
        %v1249 = vcombine.high %v209, 0.0
        %v1251 = vunpack.c.l.s4 1983009808
        %v1252 = vunpack.c.0.s8 %v1251
        %v1253 = vlaneseq
        %v1254 = vshrl.u32 %v1253, 7
        %v1255 = vsub.s32 %v1252, %v1254
        %v1256 = vrot.slane %v209, %v1255
        %v1258 = vunpack.c.l.s4 1983009808
        %v1259 = vunpack.c.0.s8 %v1258
        %v1260 = vlaneseq
        %v1261 = vshrl.u32 %v1260, 7
        %v1262 = vsub.s32 %v1259, %v1261
        %v1263 = vrot.slane %v1249, %v1262
        %v1264 = vcombine.high %v1256, 0.0
        %v1266 = vunpack.c.l.s4 1934713408
        %v1267 = vunpack.c.0.s8 %v1266
        %v1268 = vlaneseq
        %v1269 = vshrl.u32 %v1268, 7
        %v1270 = vsub.s32 %v1267, %v1269
        %v1271 = vrot.slane %v1256, %v1270
        %v1273 = vunpack.c.l.s4 1934713408
        %v1274 = vunpack.c.0.s8 %v1273
        %v1275 = vlaneseq
        %v1276 = vshrl.u32 %v1275, 7
        %v1277 = vsub.s32 %v1274, %v1276
        %v1278 = vrot.slane %v1264, %v1277
        %v1279 = vcombine.high %v1263, 0.0
        %v1281 = vunpack.c.l.s4 1934713408
        %v1282 = vunpack.c.0.s8 %v1281
        %v1283 = vlaneseq
        %v1284 = vshrl.u32 %v1283, 7
        %v1285 = vsub.s32 %v1282, %v1284
        %v1286 = vrot.slane %v1263, %v1285
        %v1288 = vunpack.c.l.s4 1934713408
        %v1289 = vunpack.c.0.s8 %v1288
        %v1290 = vlaneseq
        %v1291 = vshrl.u32 %v1290, 7
        %v1292 = vsub.s32 %v1289, %v1291
        %v1293 = vrot.slane %v1279, %v1292
        %v1294 = vcombine.high %v1271, 0.0
        %v1295 = vcombine.high %v1278, 0.0
        %v1296 = vcombine.high %v1286, 0.0
        %v1297 = vcombine.high %v1293, 0.0
        %v1298 = vcombine.high %v210, 0.0
        %v1300 = vunpack.c.l.s4 1983009808
        %v1301 = vunpack.c.0.s8 %v1300
        %v1302 = vlaneseq
        %v1303 = vshrl.u32 %v1302, 7
        %v1304 = vsub.s32 %v1301, %v1303
        %v1305 = vrot.slane %v210, %v1304
        %v1307 = vunpack.c.l.s4 1983009808
        %v1308 = vunpack.c.0.s8 %v1307
        %v1309 = vlaneseq
        %v1310 = vshrl.u32 %v1309, 7
        %v1311 = vsub.s32 %v1308, %v1310
        %v1312 = vrot.slane %v1298, %v1311
        %v1313 = vcombine.high %v1305, 0.0
        %v1315 = vunpack.c.l.s4 1934713408
        %v1316 = vunpack.c.0.s8 %v1315
        %v1317 = vlaneseq
        %v1318 = vshrl.u32 %v1317, 7
        %v1319 = vsub.s32 %v1316, %v1318
        %v1320 = vrot.slane %v1305, %v1319
        %v1322 = vunpack.c.l.s4 1934713408
        %v1323 = vunpack.c.0.s8 %v1322
        %v1324 = vlaneseq
        %v1325 = vshrl.u32 %v1324, 7
        %v1326 = vsub.s32 %v1323, %v1325
        %v1327 = vrot.slane %v1313, %v1326
        %v1328 = vcombine.high %v1312, 0.0
        %v1330 = vunpack.c.l.s4 1934713408
        %v1331 = vunpack.c.0.s8 %v1330
        %v1332 = vlaneseq
        %v1333 = vshrl.u32 %v1332, 7
        %v1334 = vsub.s32 %v1331, %v1333
        %v1335 = vrot.slane %v1312, %v1334
        %v1337 = vunpack.c.l.s4 1934713408
        %v1338 = vunpack.c.0.s8 %v1337
        %v1339 = vlaneseq
        %v1340 = vshrl.u32 %v1339, 7
        %v1341 = vsub.s32 %v1338, %v1340
        %v1342 = vrot.slane %v1328, %v1341
        %v1343 = vcombine.high %v1320, 0.0
        %v1344 = vcombine.high %v1327, 0.0
        %v1345 = vcombine.high %v1335, 0.0
        %v1346 = vcombine.high %v1342, 0.0
        %v1347 = vcombine.high %v211, 0.0
        %v1349 = vunpack.c.l.s4 1983009808
        %v1350 = vunpack.c.0.s8 %v1349
        %v1351 = vlaneseq
        %v1352 = vshrl.u32 %v1351, 7
        %v1353 = vsub.s32 %v1350, %v1352
        %v1354 = vrot.slane %v211, %v1353
        %v1356 = vunpack.c.l.s4 1983009808
        %v1357 = vunpack.c.0.s8 %v1356
        %v1358 = vlaneseq
        %v1359 = vshrl.u32 %v1358, 7
        %v1360 = vsub.s32 %v1357, %v1359
        %v1361 = vrot.slane %v1347, %v1360
        %v1362 = vcombine.high %v1354, 0.0
        %v1364 = vunpack.c.l.s4 1934713408
        %v1365 = vunpack.c.0.s8 %v1364
        %v1366 = vlaneseq
        %v1367 = vshrl.u32 %v1366, 7
        %v1368 = vsub.s32 %v1365, %v1367
        %v1369 = vrot.slane %v1354, %v1368
        %v1371 = vunpack.c.l.s4 1934713408
        %v1372 = vunpack.c.0.s8 %v1371
        %v1373 = vlaneseq
        %v1374 = vshrl.u32 %v1373, 7
        %v1375 = vsub.s32 %v1372, %v1374
        %v1376 = vrot.slane %v1362, %v1375
        %v1377 = vcombine.high %v1361, 0.0
        %v1379 = vunpack.c.l.s4 1934713408
        %v1380 = vunpack.c.0.s8 %v1379
        %v1381 = vlaneseq
        %v1382 = vshrl.u32 %v1381, 7
        %v1383 = vsub.s32 %v1380, %v1382
        %v1384 = vrot.slane %v1361, %v1383
        %v1386 = vunpack.c.l.s4 1934713408
        %v1387 = vunpack.c.0.s8 %v1386
        %v1388 = vlaneseq
        %v1389 = vshrl.u32 %v1388, 7
        %v1390 = vsub.s32 %v1387, %v1389
        %v1391 = vrot.slane %v1377, %v1390
        %v1392 = vcombine.high %v1369, 0.0
        %v1393 = vcombine.high %v1376, 0.0
        %v1394 = vcombine.high %v1384, 0.0
        %v1395 = vcombine.high %v1391, 0.0
        %v1396 = vcombine.high %v212, 0.0
        %v1398 = vunpack.c.l.s4 1983009808
        %v1399 = vunpack.c.0.s8 %v1398
        %v1400 = vlaneseq
        %v1401 = vshrl.u32 %v1400, 7
        %v1402 = vsub.s32 %v1399, %v1401
        %v1403 = vrot.slane %v212, %v1402
        %v1405 = vunpack.c.l.s4 1983009808
        %v1406 = vunpack.c.0.s8 %v1405
        %v1407 = vlaneseq
        %v1408 = vshrl.u32 %v1407, 7
        %v1409 = vsub.s32 %v1406, %v1408
        %v1410 = vrot.slane %v1396, %v1409
        %v1411 = vcombine.high %v1403, 0.0
        %v1413 = vunpack.c.l.s4 1934713408
        %v1414 = vunpack.c.0.s8 %v1413
        %v1415 = vlaneseq
        %v1416 = vshrl.u32 %v1415, 7
        %v1417 = vsub.s32 %v1414, %v1416
        %v1418 = vrot.slane %v1403, %v1417
        %v1420 = vunpack.c.l.s4 1934713408
        %v1421 = vunpack.c.0.s8 %v1420
        %v1422 = vlaneseq
        %v1423 = vshrl.u32 %v1422, 7
        %v1424 = vsub.s32 %v1421, %v1423
        %v1425 = vrot.slane %v1411, %v1424
        %v1426 = vcombine.high %v1410, 0.0
        %v1428 = vunpack.c.l.s4 1934713408
        %v1429 = vunpack.c.0.s8 %v1428
        %v1430 = vlaneseq
        %v1431 = vshrl.u32 %v1430, 7
        %v1432 = vsub.s32 %v1429, %v1431
        %v1433 = vrot.slane %v1410, %v1432
        %v1435 = vunpack.c.l.s4 1934713408
        %v1436 = vunpack.c.0.s8 %v1435
        %v1437 = vlaneseq
        %v1438 = vshrl.u32 %v1437, 7
        %v1439 = vsub.s32 %v1436, %v1438
        %v1440 = vrot.slane %v1426, %v1439
        %v1441 = vcombine.high %v1418, 0.0
        %v1442 = vcombine.high %v1425, 0.0
        %v1443 = vcombine.high %v1433, 0.0
        %v1444 = vcombine.high %v1440, 0.0
        %v1445 = vcombine.high %v213, 0.0
        %v1447 = vunpack.c.l.s4 1983009808
        %v1448 = vunpack.c.0.s8 %v1447
        %v1449 = vlaneseq
        %v1450 = vshrl.u32 %v1449, 7
        %v1451 = vsub.s32 %v1448, %v1450
        %v1452 = vrot.slane %v213, %v1451
        %v1454 = vunpack.c.l.s4 1983009808
        %v1455 = vunpack.c.0.s8 %v1454
        %v1456 = vlaneseq
        %v1457 = vshrl.u32 %v1456, 7
        %v1458 = vsub.s32 %v1455, %v1457
        %v1459 = vrot.slane %v1445, %v1458
        %v1460 = vcombine.high %v1452, 0.0
        %v1462 = vunpack.c.l.s4 1934713408
        %v1463 = vunpack.c.0.s8 %v1462
        %v1464 = vlaneseq
        %v1465 = vshrl.u32 %v1464, 7
        %v1466 = vsub.s32 %v1463, %v1465
        %v1467 = vrot.slane %v1452, %v1466
        %v1469 = vunpack.c.l.s4 1934713408
        %v1470 = vunpack.c.0.s8 %v1469
        %v1471 = vlaneseq
        %v1472 = vshrl.u32 %v1471, 7
        %v1473 = vsub.s32 %v1470, %v1472
        %v1474 = vrot.slane %v1460, %v1473
        %v1475 = vcombine.high %v1459, 0.0
        %v1477 = vunpack.c.l.s4 1934713408
        %v1478 = vunpack.c.0.s8 %v1477
        %v1479 = vlaneseq
        %v1480 = vshrl.u32 %v1479, 7
        %v1481 = vsub.s32 %v1478, %v1480
        %v1482 = vrot.slane %v1459, %v1481
        %v1484 = vunpack.c.l.s4 1934713408
        %v1485 = vunpack.c.0.s8 %v1484
        %v1486 = vlaneseq
        %v1487 = vshrl.u32 %v1486, 7
        %v1488 = vsub.s32 %v1485, %v1487
        %v1489 = vrot.slane %v1475, %v1488
        %v1490 = vcombine.high %v1467, 0.0
        %v1491 = vcombine.high %v1474, 0.0
        %v1492 = vcombine.high %v1482, 0.0
        %v1493 = vcombine.high %v1489, 0.0
        %v1494 = vcombine.high %v214, 0.0
        %v1496 = vunpack.c.l.s4 1983009808
        %v1497 = vunpack.c.0.s8 %v1496
        %v1498 = vlaneseq
        %v1499 = vshrl.u32 %v1498, 7
        %v1500 = vsub.s32 %v1497, %v1499
        %v1501 = vrot.slane %v214, %v1500
        %v1503 = vunpack.c.l.s4 1983009808
        %v1504 = vunpack.c.0.s8 %v1503
        %v1505 = vlaneseq
        %v1506 = vshrl.u32 %v1505, 7
        %v1507 = vsub.s32 %v1504, %v1506
        %v1508 = vrot.slane %v1494, %v1507
        %v1509 = vcombine.high %v1501, 0.0
        %v1511 = vunpack.c.l.s4 1934713408
        %v1512 = vunpack.c.0.s8 %v1511
        %v1513 = vlaneseq
        %v1514 = vshrl.u32 %v1513, 7
        %v1515 = vsub.s32 %v1512, %v1514
        %v1516 = vrot.slane %v1501, %v1515
        %v1518 = vunpack.c.l.s4 1934713408
        %v1519 = vunpack.c.0.s8 %v1518
        %v1520 = vlaneseq
        %v1521 = vshrl.u32 %v1520, 7
        %v1522 = vsub.s32 %v1519, %v1521
        %v1523 = vrot.slane %v1509, %v1522
        %v1524 = vcombine.high %v1508, 0.0
        %v1526 = vunpack.c.l.s4 1934713408
        %v1527 = vunpack.c.0.s8 %v1526
        %v1528 = vlaneseq
        %v1529 = vshrl.u32 %v1528, 7
        %v1530 = vsub.s32 %v1527, %v1529
        %v1531 = vrot.slane %v1508, %v1530
        %v1533 = vunpack.c.l.s4 1934713408
        %v1534 = vunpack.c.0.s8 %v1533
        %v1535 = vlaneseq
        %v1536 = vshrl.u32 %v1535, 7
        %v1537 = vsub.s32 %v1534, %v1536
        %v1538 = vrot.slane %v1524, %v1537
        %v1539 = vcombine.high %v1516, 0.0
        %v1540 = vcombine.high %v1523, 0.0
        %v1541 = vcombine.high %v1531, 0.0
        %v1542 = vcombine.high %v1538, 0.0
        %v1543 = vcombine.high %v215, 0.0
        %v1545 = vunpack.c.l.s4 1983009808
        %v1546 = vunpack.c.0.s8 %v1545
        %v1547 = vlaneseq
        %v1548 = vshrl.u32 %v1547, 7
        %v1549 = vsub.s32 %v1546, %v1548
        %v1550 = vrot.slane %v215, %v1549
        %v1552 = vunpack.c.l.s4 1983009808
        %v1553 = vunpack.c.0.s8 %v1552
        %v1554 = vlaneseq
        %v1555 = vshrl.u32 %v1554, 7
        %v1556 = vsub.s32 %v1553, %v1555
        %v1557 = vrot.slane %v1543, %v1556
        %v1558 = vcombine.high %v1550, 0.0
        %v1560 = vunpack.c.l.s4 1934713408
        %v1561 = vunpack.c.0.s8 %v1560
        %v1562 = vlaneseq
        %v1563 = vshrl.u32 %v1562, 7
        %v1564 = vsub.s32 %v1561, %v1563
        %v1565 = vrot.slane %v1550, %v1564
        %v1567 = vunpack.c.l.s4 1934713408
        %v1568 = vunpack.c.0.s8 %v1567
        %v1569 = vlaneseq
        %v1570 = vshrl.u32 %v1569, 7
        %v1571 = vsub.s32 %v1568, %v1570
        %v1572 = vrot.slane %v1558, %v1571
        %v1573 = vcombine.high %v1557, 0.0
        %v1575 = vunpack.c.l.s4 1934713408
        %v1576 = vunpack.c.0.s8 %v1575
        %v1577 = vlaneseq
        %v1578 = vshrl.u32 %v1577, 7
        %v1579 = vsub.s32 %v1576, %v1578
        %v1580 = vrot.slane %v1557, %v1579
        %v1582 = vunpack.c.l.s4 1934713408
        %v1583 = vunpack.c.0.s8 %v1582
        %v1584 = vlaneseq
        %v1585 = vshrl.u32 %v1584, 7
        %v1586 = vsub.s32 %v1583, %v1585
        %v1587 = vrot.slane %v1573, %v1586
        %v1588 = vcombine.high %v1565, 0.0
        %v1589 = vcombine.high %v1572, 0.0
        %v1590 = vcombine.high %v1580, 0.0
        %v1591 = vcombine.high %v1587, 0.0
        %v1592 = vcombine.high %v216, 0.0
        %v1594 = vunpack.c.l.s4 1983009808
        %v1595 = vunpack.c.0.s8 %v1594
        %v1596 = vlaneseq
        %v1597 = vshrl.u32 %v1596, 7
        %v1598 = vsub.s32 %v1595, %v1597
        %v1599 = vrot.slane %v216, %v1598
        %v1601 = vunpack.c.l.s4 1983009808
        %v1602 = vunpack.c.0.s8 %v1601
        %v1603 = vlaneseq
        %v1604 = vshrl.u32 %v1603, 7
        %v1605 = vsub.s32 %v1602, %v1604
        %v1606 = vrot.slane %v1592, %v1605
        %v1607 = vcombine.high %v1599, 0.0
        %v1609 = vunpack.c.l.s4 1934713408
        %v1610 = vunpack.c.0.s8 %v1609
        %v1611 = vlaneseq
        %v1612 = vshrl.u32 %v1611, 7
        %v1613 = vsub.s32 %v1610, %v1612
        %v1614 = vrot.slane %v1599, %v1613
        %v1616 = vunpack.c.l.s4 1934713408
        %v1617 = vunpack.c.0.s8 %v1616
        %v1618 = vlaneseq
        %v1619 = vshrl.u32 %v1618, 7
        %v1620 = vsub.s32 %v1617, %v1619
        %v1621 = vrot.slane %v1607, %v1620
        %v1622 = vcombine.high %v1606, 0.0
        %v1624 = vunpack.c.l.s4 1934713408
        %v1625 = vunpack.c.0.s8 %v1624
        %v1626 = vlaneseq
        %v1627 = vshrl.u32 %v1626, 7
        %v1628 = vsub.s32 %v1625, %v1627
        %v1629 = vrot.slane %v1606, %v1628
        %v1631 = vunpack.c.l.s4 1934713408
        %v1632 = vunpack.c.0.s8 %v1631
        %v1633 = vlaneseq
        %v1634 = vshrl.u32 %v1633, 7
        %v1635 = vsub.s32 %v1632, %v1634
        %v1636 = vrot.slane %v1622, %v1635
        %v1637 = vcombine.high %v1614, 0.0
        %v1638 = vcombine.high %v1621, 0.0
        %v1639 = vcombine.high %v1629, 0.0
        %v1640 = vcombine.high %v1636, 0.0
        %v1641 = vcombine.high %v217, 0.0
        %v1643 = vunpack.c.l.s4 1983009808
        %v1644 = vunpack.c.0.s8 %v1643
        %v1645 = vlaneseq
        %v1646 = vshrl.u32 %v1645, 7
        %v1647 = vsub.s32 %v1644, %v1646
        %v1648 = vrot.slane %v217, %v1647
        %v1650 = vunpack.c.l.s4 1983009808
        %v1651 = vunpack.c.0.s8 %v1650
        %v1652 = vlaneseq
        %v1653 = vshrl.u32 %v1652, 7
        %v1654 = vsub.s32 %v1651, %v1653
        %v1655 = vrot.slane %v1641, %v1654
        %v1656 = vcombine.high %v1648, 0.0
        %v1658 = vunpack.c.l.s4 1934713408
        %v1659 = vunpack.c.0.s8 %v1658
        %v1660 = vlaneseq
        %v1661 = vshrl.u32 %v1660, 7
        %v1662 = vsub.s32 %v1659, %v1661
        %v1663 = vrot.slane %v1648, %v1662
        %v1665 = vunpack.c.l.s4 1934713408
        %v1666 = vunpack.c.0.s8 %v1665
        %v1667 = vlaneseq
        %v1668 = vshrl.u32 %v1667, 7
        %v1669 = vsub.s32 %v1666, %v1668
        %v1670 = vrot.slane %v1656, %v1669
        %v1671 = vcombine.high %v1655, 0.0
        %v1673 = vunpack.c.l.s4 1934713408
        %v1674 = vunpack.c.0.s8 %v1673
        %v1675 = vlaneseq
        %v1676 = vshrl.u32 %v1675, 7
        %v1677 = vsub.s32 %v1674, %v1676
        %v1678 = vrot.slane %v1655, %v1677
        %v1680 = vunpack.c.l.s4 1934713408
        %v1681 = vunpack.c.0.s8 %v1680
        %v1682 = vlaneseq
        %v1683 = vshrl.u32 %v1682, 7
        %v1684 = vsub.s32 %v1681, %v1683
        %v1685 = vrot.slane %v1671, %v1684
        %v1686 = vcombine.high %v1663, 0.0
        %v1687 = vcombine.high %v1670, 0.0
        %v1688 = vcombine.high %v1678, 0.0
        %v1689 = vcombine.high %v1685, 0.0
        %v1690 = vcombine.high %v218, 0.0
        %v1692 = vunpack.c.l.s4 1983009808
        %v1693 = vunpack.c.0.s8 %v1692
        %v1694 = vlaneseq
        %v1695 = vshrl.u32 %v1694, 7
        %v1696 = vsub.s32 %v1693, %v1695
        %v1697 = vrot.slane %v218, %v1696
        %v1699 = vunpack.c.l.s4 1983009808
        %v1700 = vunpack.c.0.s8 %v1699
        %v1701 = vlaneseq
        %v1702 = vshrl.u32 %v1701, 7
        %v1703 = vsub.s32 %v1700, %v1702
        %v1704 = vrot.slane %v1690, %v1703
        %v1705 = vcombine.high %v1697, 0.0
        %v1707 = vunpack.c.l.s4 1934713408
        %v1708 = vunpack.c.0.s8 %v1707
        %v1709 = vlaneseq
        %v1710 = vshrl.u32 %v1709, 7
        %v1711 = vsub.s32 %v1708, %v1710
        %v1712 = vrot.slane %v1697, %v1711
        %v1714 = vunpack.c.l.s4 1934713408
        %v1715 = vunpack.c.0.s8 %v1714
        %v1716 = vlaneseq
        %v1717 = vshrl.u32 %v1716, 7
        %v1718 = vsub.s32 %v1715, %v1717
        %v1719 = vrot.slane %v1705, %v1718
        %v1720 = vcombine.high %v1704, 0.0
        %v1722 = vunpack.c.l.s4 1934713408
        %v1723 = vunpack.c.0.s8 %v1722
        %v1724 = vlaneseq
        %v1725 = vshrl.u32 %v1724, 7
        %v1726 = vsub.s32 %v1723, %v1725
        %v1727 = vrot.slane %v1704, %v1726
        %v1729 = vunpack.c.l.s4 1934713408
        %v1730 = vunpack.c.0.s8 %v1729
        %v1731 = vlaneseq
        %v1732 = vshrl.u32 %v1731, 7
        %v1733 = vsub.s32 %v1730, %v1732
        %v1734 = vrot.slane %v1720, %v1733
        %v1735 = vcombine.high %v1712, 0.0
        %v1736 = vcombine.high %v1719, 0.0
        %v1737 = vcombine.high %v1727, 0.0
        %v1738 = vcombine.high %v1734, 0.0
        %v1739 = vcombine.high %v219, 0.0
        %v1741 = vunpack.c.l.s4 1983009808
        %v1742 = vunpack.c.0.s8 %v1741
        %v1743 = vlaneseq
        %v1744 = vshrl.u32 %v1743, 7
        %v1745 = vsub.s32 %v1742, %v1744
        %v1746 = vrot.slane %v219, %v1745
        %v1748 = vunpack.c.l.s4 1983009808
        %v1749 = vunpack.c.0.s8 %v1748
        %v1750 = vlaneseq
        %v1751 = vshrl.u32 %v1750, 7
        %v1752 = vsub.s32 %v1749, %v1751
        %v1753 = vrot.slane %v1739, %v1752
        %v1754 = vcombine.high %v1746, 0.0
        %v1756 = vunpack.c.l.s4 1934713408
        %v1757 = vunpack.c.0.s8 %v1756
        %v1758 = vlaneseq
        %v1759 = vshrl.u32 %v1758, 7
        %v1760 = vsub.s32 %v1757, %v1759
        %v1761 = vrot.slane %v1746, %v1760
        %v1763 = vunpack.c.l.s4 1934713408
        %v1764 = vunpack.c.0.s8 %v1763
        %v1765 = vlaneseq
        %v1766 = vshrl.u32 %v1765, 7
        %v1767 = vsub.s32 %v1764, %v1766
        %v1768 = vrot.slane %v1754, %v1767
        %v1769 = vcombine.high %v1753, 0.0
        %v1771 = vunpack.c.l.s4 1934713408
        %v1772 = vunpack.c.0.s8 %v1771
        %v1773 = vlaneseq
        %v1774 = vshrl.u32 %v1773, 7
        %v1775 = vsub.s32 %v1772, %v1774
        %v1776 = vrot.slane %v1753, %v1775
        %v1778 = vunpack.c.l.s4 1934713408
        %v1779 = vunpack.c.0.s8 %v1778
        %v1780 = vlaneseq
        %v1781 = vshrl.u32 %v1780, 7
        %v1782 = vsub.s32 %v1779, %v1781
        %v1783 = vrot.slane %v1769, %v1782
        %v1784 = vcombine.high %v1761, 0.0
        %v1785 = vcombine.high %v1768, 0.0
        %v1786 = vcombine.high %v1776, 0.0
        %v1787 = vcombine.high %v1783, 0.0
        %1789 = vrot.lane.b32.xlu0 %v265, 4
        %v1790 = vpop.permute.xlu0 %1789
        %1793 = vrot.lane.b32.xlu0 %v249, 8
        %v1794 = vpop.permute.xlu0 %1793
        %1797 = vrot.lane.b32.xlu0 %v266, 12
        %v1798 = vpop.permute.xlu0 %1797
        %1801 = vrot.lane.b32.xlu0 %v257, 16
        %v1802 = vpop.permute.xlu0 %1801
        %1805 = vrot.lane.b32.xlu0 %v267, 20
        %v1806 = vpop.permute.xlu0 %1805
        %1809 = vrot.lane.b32.xlu0 %v264, 24
        %v1810 = vpop.permute.xlu0 %1809
        %1813 = vrot.lane.b32.xlu0 %v268, 28
        %v1814 = vpop.permute.xlu0 %1813
        %1817 = vrot.lane.b32.xlu0 %v291, 32
        %v1818 = vpop.permute.xlu0 %1817
        %1821 = vrot.lane.b32.xlu0 %v314, 36
        %v1822 = vpop.permute.xlu0 %1821
        %1825 = vrot.lane.b32.xlu0 %v298, 40
        %v1826 = vpop.permute.xlu0 %1825
        %1829 = vrot.lane.b32.xlu0 %v315, 44
        %v1830 = vpop.permute.xlu0 %1829
        %1833 = vrot.lane.b32.xlu0 %v306, 48
        %v1834 = vpop.permute.xlu0 %1833
        %1837 = vrot.lane.b32.xlu0 %v316, 52
        %v1838 = vpop.permute.xlu0 %1837
        %1841 = vrot.lane.b32.xlu0 %v313, 56
        %v1842 = vpop.permute.xlu0 %1841
        %1845 = vrot.lane.b32.xlu0 %v317, 60
        %v1846 = vpop.permute.xlu0 %1845
        %1849 = vrot.lane.b32.xlu0 %v340, 64
        %v1850 = vpop.permute.xlu0 %1849
        %1853 = vrot.lane.b32.xlu0 %v363, 68
        %v1854 = vpop.permute.xlu0 %1853
        %1857 = vrot.lane.b32.xlu0 %v347, 72
        %v1858 = vpop.permute.xlu0 %1857
        %1861 = vrot.lane.b32.xlu0 %v364, 76
        %v1862 = vpop.permute.xlu0 %1861
        %1865 = vrot.lane.b32.xlu0 %v355, 80
        %v1866 = vpop.permute.xlu0 %1865
        %1869 = vrot.lane.b32.xlu0 %v365, 84
        %v1870 = vpop.permute.xlu0 %1869
        %1873 = vrot.lane.b32.xlu0 %v362, 88
        %v1874 = vpop.permute.xlu0 %1873
        %1877 = vrot.lane.b32.xlu0 %v366, 92
        %v1878 = vpop.permute.xlu0 %1877
        %1881 = vrot.lane.b32.xlu0 %v389, 96
        %v1882 = vpop.permute.xlu0 %1881
        %1885 = vrot.lane.b32.xlu0 %v412, 100
        %v1886 = vpop.permute.xlu0 %1885
        %1889 = vrot.lane.b32.xlu0 %v396, 104
        %v1890 = vpop.permute.xlu0 %1889
        %1893 = vrot.lane.b32.xlu0 %v413, 108
        %v1894 = vpop.permute.xlu0 %1893
        %1897 = vrot.lane.b32.xlu0 %v404, 112
        %v1898 = vpop.permute.xlu0 %1897
        %1901 = vrot.lane.b32.xlu0 %v414, 116
        %v1902 = vpop.permute.xlu0 %1901
        %1905 = vrot.lane.b32.xlu0 %v411, 120
        %v1906 = vpop.permute.xlu0 %1905
        %1909 = vrot.lane.b32.xlu0 %v415, 124
        %v1910 = vpop.permute.xlu0 %1909
        %1913 = vrot.lane.b32.xlu0 %v461, 4
        %v1914 = vpop.permute.xlu0 %1913
        %1917 = vrot.lane.b32.xlu0 %v445, 8
        %v1918 = vpop.permute.xlu0 %1917
        %1921 = vrot.lane.b32.xlu0 %v462, 12
        %v1922 = vpop.permute.xlu0 %1921
        %1925 = vrot.lane.b32.xlu0 %v453, 16
        %v1926 = vpop.permute.xlu0 %1925
        %1929 = vrot.lane.b32.xlu0 %v463, 20
        %v1930 = vpop.permute.xlu0 %1929
        %1933 = vrot.lane.b32.xlu0 %v460, 24
        %v1934 = vpop.permute.xlu0 %1933
        %1937 = vrot.lane.b32.xlu0 %v464, 28
        %v1938 = vpop.permute.xlu0 %1937
        %1941 = vrot.lane.b32.xlu0 %v487, 32
        %v1942 = vpop.permute.xlu0 %1941
        %1945 = vrot.lane.b32.xlu0 %v510, 36
        %v1946 = vpop.permute.xlu0 %1945
        %1949 = vrot.lane.b32.xlu0 %v494, 40
        %v1950 = vpop.permute.xlu0 %1949
        %1953 = vrot.lane.b32.xlu0 %v511, 44
        %v1954 = vpop.permute.xlu0 %1953
        %1957 = vrot.lane.b32.xlu0 %v502, 48
        %v1958 = vpop.permute.xlu0 %1957
        %1961 = vrot.lane.b32.xlu0 %v512, 52
        %v1962 = vpop.permute.xlu0 %1961
        %1965 = vrot.lane.b32.xlu0 %v509, 56
        %v1966 = vpop.permute.xlu0 %1965
        %1969 = vrot.lane.b32.xlu0 %v513, 60
        %v1970 = vpop.permute.xlu0 %1969
        %1973 = vrot.lane.b32.xlu0 %v536, 64
        %v1974 = vpop.permute.xlu0 %1973
        %1977 = vrot.lane.b32.xlu0 %v559, 68
        %v1978 = vpop.permute.xlu0 %1977
        %1981 = vrot.lane.b32.xlu0 %v543, 72
        %v1982 = vpop.permute.xlu0 %1981
        %1985 = vrot.lane.b32.xlu0 %v560, 76
        %v1986 = vpop.permute.xlu0 %1985
        %1989 = vrot.lane.b32.xlu0 %v551, 80
        %v1990 = vpop.permute.xlu0 %1989
        %1993 = vrot.lane.b32.xlu0 %v561, 84
        %v1994 = vpop.permute.xlu0 %1993
        %1997 = vrot.lane.b32.xlu0 %v558, 88
        %v1998 = vpop.permute.xlu0 %1997
        %2001 = vrot.lane.b32.xlu0 %v562, 92
        %v2002 = vpop.permute.xlu0 %2001
        %2005 = vrot.lane.b32.xlu0 %v585, 96
        %v2006 = vpop.permute.xlu0 %2005
        %2009 = vrot.lane.b32.xlu0 %v608, 100
        %v2010 = vpop.permute.xlu0 %2009
        %2013 = vrot.lane.b32.xlu0 %v592, 104
        %v2014 = vpop.permute.xlu0 %2013
        %2017 = vrot.lane.b32.xlu0 %v609, 108
        %v2018 = vpop.permute.xlu0 %2017
        %2021 = vrot.lane.b32.xlu0 %v600, 112
        %v2022 = vpop.permute.xlu0 %2021
        %2025 = vrot.lane.b32.xlu0 %v610, 116
        %v2026 = vpop.permute.xlu0 %2025
        %2029 = vrot.lane.b32.xlu0 %v607, 120
        %v2030 = vpop.permute.xlu0 %2029
        %2033 = vrot.lane.b32.xlu0 %v611, 124
        %v2034 = vpop.permute.xlu0 %2033
        %2037 = vrot.lane.b32.xlu0 %v657, 4
        %v2038 = vpop.permute.xlu0 %2037
        %2041 = vrot.lane.b32.xlu0 %v641, 8
        %v2042 = vpop.permute.xlu0 %2041
        %2045 = vrot.lane.b32.xlu0 %v658, 12
        %v2046 = vpop.permute.xlu0 %2045
        %2049 = vrot.lane.b32.xlu0 %v649, 16
        %v2050 = vpop.permute.xlu0 %2049
        %2053 = vrot.lane.b32.xlu0 %v659, 20
        %v2054 = vpop.permute.xlu0 %2053
        %2057 = vrot.lane.b32.xlu0 %v656, 24
        %v2058 = vpop.permute.xlu0 %2057
        %2061 = vrot.lane.b32.xlu0 %v660, 28
        %v2062 = vpop.permute.xlu0 %2061
        %2065 = vrot.lane.b32.xlu0 %v683, 32
        %v2066 = vpop.permute.xlu0 %2065
        %2069 = vrot.lane.b32.xlu0 %v706, 36
        %v2070 = vpop.permute.xlu0 %2069
        %2073 = vrot.lane.b32.xlu0 %v690, 40
        %v2074 = vpop.permute.xlu0 %2073
        %2077 = vrot.lane.b32.xlu0 %v707, 44
        %v2078 = vpop.permute.xlu0 %2077
        %2081 = vrot.lane.b32.xlu0 %v698, 48
        %v2082 = vpop.permute.xlu0 %2081
        %2085 = vrot.lane.b32.xlu0 %v708, 52
        %v2086 = vpop.permute.xlu0 %2085
        %2089 = vrot.lane.b32.xlu0 %v705, 56
        %v2090 = vpop.permute.xlu0 %2089
        %2093 = vrot.lane.b32.xlu0 %v709, 60
        %v2094 = vpop.permute.xlu0 %2093
        %2097 = vrot.lane.b32.xlu0 %v732, 64
        %v2098 = vpop.permute.xlu0 %2097
        %2101 = vrot.lane.b32.xlu0 %v755, 68
        %v2102 = vpop.permute.xlu0 %2101
        %2105 = vrot.lane.b32.xlu0 %v739, 72
        %v2106 = vpop.permute.xlu0 %2105
        %2109 = vrot.lane.b32.xlu0 %v756, 76
        %v2110 = vpop.permute.xlu0 %2109
        %2113 = vrot.lane.b32.xlu0 %v747, 80
        %v2114 = vpop.permute.xlu0 %2113
        %2117 = vrot.lane.b32.xlu0 %v757, 84
        %v2118 = vpop.permute.xlu0 %2117
        %2121 = vrot.lane.b32.xlu0 %v754, 88
        %v2122 = vpop.permute.xlu0 %2121
        %2125 = vrot.lane.b32.xlu0 %v758, 92
        %v2126 = vpop.permute.xlu0 %2125
        %2129 = vrot.lane.b32.xlu0 %v781, 96
        %v2130 = vpop.permute.xlu0 %2129
        %2133 = vrot.lane.b32.xlu0 %v804, 100
        %v2134 = vpop.permute.xlu0 %2133
        %2137 = vrot.lane.b32.xlu0 %v788, 104
        %v2138 = vpop.permute.xlu0 %2137
        %2141 = vrot.lane.b32.xlu0 %v805, 108
        %v2142 = vpop.permute.xlu0 %2141
        %2145 = vrot.lane.b32.xlu0 %v796, 112
        %v2146 = vpop.permute.xlu0 %2145
        %2149 = vrot.lane.b32.xlu0 %v806, 116
        %v2150 = vpop.permute.xlu0 %2149
        %2153 = vrot.lane.b32.xlu0 %v803, 120
        %v2154 = vpop.permute.xlu0 %2153
        %2157 = vrot.lane.b32.xlu0 %v807, 124
        %v2158 = vpop.permute.xlu0 %2157
        %2161 = vrot.lane.b32.xlu0 %v853, 4
        %v2162 = vpop.permute.xlu0 %2161
        %2165 = vrot.lane.b32.xlu0 %v837, 8
        %v2166 = vpop.permute.xlu0 %2165
        %2169 = vrot.lane.b32.xlu0 %v854, 12
        %v2170 = vpop.permute.xlu0 %2169
        %2173 = vrot.lane.b32.xlu0 %v845, 16
        %v2174 = vpop.permute.xlu0 %2173
        %2177 = vrot.lane.b32.xlu0 %v855, 20
        %v2178 = vpop.permute.xlu0 %2177
        %2181 = vrot.lane.b32.xlu0 %v852, 24
        %v2182 = vpop.permute.xlu0 %2181
        %2185 = vrot.lane.b32.xlu0 %v856, 28
        %v2186 = vpop.permute.xlu0 %2185
        %2189 = vrot.lane.b32.xlu0 %v879, 32
        %v2190 = vpop.permute.xlu0 %2189
        %2193 = vrot.lane.b32.xlu0 %v902, 36
        %v2194 = vpop.permute.xlu0 %2193
        %2197 = vrot.lane.b32.xlu0 %v886, 40
        %v2198 = vpop.permute.xlu0 %2197
        %2201 = vrot.lane.b32.xlu0 %v903, 44
        %v2202 = vpop.permute.xlu0 %2201
        %2205 = vrot.lane.b32.xlu0 %v894, 48
        %v2206 = vpop.permute.xlu0 %2205
        %2209 = vrot.lane.b32.xlu0 %v904, 52
        %v2210 = vpop.permute.xlu0 %2209
        %2213 = vrot.lane.b32.xlu0 %v901, 56
        %v2214 = vpop.permute.xlu0 %2213
        %2217 = vrot.lane.b32.xlu0 %v905, 60
        %v2218 = vpop.permute.xlu0 %2217
        %2221 = vrot.lane.b32.xlu0 %v928, 64
        %v2222 = vpop.permute.xlu0 %2221
        %2225 = vrot.lane.b32.xlu0 %v951, 68
        %v2226 = vpop.permute.xlu0 %2225
        %2229 = vrot.lane.b32.xlu0 %v935, 72
        %v2230 = vpop.permute.xlu0 %2229
        %2233 = vrot.lane.b32.xlu0 %v952, 76
        %v2234 = vpop.permute.xlu0 %2233
        %2237 = vrot.lane.b32.xlu0 %v943, 80
        %v2238 = vpop.permute.xlu0 %2237
        %2241 = vrot.lane.b32.xlu0 %v953, 84
        %v2242 = vpop.permute.xlu0 %2241
        %2245 = vrot.lane.b32.xlu0 %v950, 88
        %v2246 = vpop.permute.xlu0 %2245
        %2249 = vrot.lane.b32.xlu0 %v954, 92
        %v2250 = vpop.permute.xlu0 %2249
        %2253 = vrot.lane.b32.xlu0 %v977, 96
        %v2254 = vpop.permute.xlu0 %2253
        %2257 = vrot.lane.b32.xlu0 %v1000, 100
        %v2258 = vpop.permute.xlu0 %2257
        %2261 = vrot.lane.b32.xlu0 %v984, 104
        %v2262 = vpop.permute.xlu0 %2261
        %2265 = vrot.lane.b32.xlu0 %v1001, 108
        %v2266 = vpop.permute.xlu0 %2265
        %2269 = vrot.lane.b32.xlu0 %v992, 112
        %v2270 = vpop.permute.xlu0 %2269
        %2273 = vrot.lane.b32.xlu0 %v1002, 116
        %v2274 = vpop.permute.xlu0 %2273
        %2277 = vrot.lane.b32.xlu0 %v999, 120
        %v2278 = vpop.permute.xlu0 %2277
        %2281 = vrot.lane.b32.xlu0 %v1003, 124
        %v2282 = vpop.permute.xlu0 %2281
        %2285 = vrot.lane.b32.xlu0 %v1049, 4
        %v2286 = vpop.permute.xlu0 %2285
        %2289 = vrot.lane.b32.xlu0 %v1033, 8
        %v2290 = vpop.permute.xlu0 %2289
        %2293 = vrot.lane.b32.xlu0 %v1050, 12
        %v2294 = vpop.permute.xlu0 %2293
        %2297 = vrot.lane.b32.xlu0 %v1041, 16
        %v2298 = vpop.permute.xlu0 %2297
        %2301 = vrot.lane.b32.xlu0 %v1051, 20
        %v2302 = vpop.permute.xlu0 %2301
        %2305 = vrot.lane.b32.xlu0 %v1048, 24
        %v2306 = vpop.permute.xlu0 %2305
        %2309 = vrot.lane.b32.xlu0 %v1052, 28
        %v2310 = vpop.permute.xlu0 %2309
        %2313 = vrot.lane.b32.xlu0 %v1075, 32
        %v2314 = vpop.permute.xlu0 %2313
        %2317 = vrot.lane.b32.xlu0 %v1098, 36
        %v2318 = vpop.permute.xlu0 %2317
        %2321 = vrot.lane.b32.xlu0 %v1082, 40
        %v2322 = vpop.permute.xlu0 %2321
        %2325 = vrot.lane.b32.xlu0 %v1099, 44
        %v2326 = vpop.permute.xlu0 %2325
        %2329 = vrot.lane.b32.xlu0 %v1090, 48
        %v2330 = vpop.permute.xlu0 %2329
        %2333 = vrot.lane.b32.xlu0 %v1100, 52
        %v2334 = vpop.permute.xlu0 %2333
        %2337 = vrot.lane.b32.xlu0 %v1097, 56
        %v2338 = vpop.permute.xlu0 %2337
        %2341 = vrot.lane.b32.xlu0 %v1101, 60
        %v2342 = vpop.permute.xlu0 %2341
        %2345 = vrot.lane.b32.xlu0 %v1124, 64
        %v2346 = vpop.permute.xlu0 %2345
        %2349 = vrot.lane.b32.xlu0 %v1147, 68
        %v2350 = vpop.permute.xlu0 %2349
        %2353 = vrot.lane.b32.xlu0 %v1131, 72
        %v2354 = vpop.permute.xlu0 %2353
        %2357 = vrot.lane.b32.xlu0 %v1148, 76
        %v2358 = vpop.permute.xlu0 %2357
        %2361 = vrot.lane.b32.xlu0 %v1139, 80
        %v2362 = vpop.permute.xlu0 %2361
        %2365 = vrot.lane.b32.xlu0 %v1149, 84
        %v2366 = vpop.permute.xlu0 %2365
        %2369 = vrot.lane.b32.xlu0 %v1146, 88
        %v2370 = vpop.permute.xlu0 %2369
        %2373 = vrot.lane.b32.xlu0 %v1150, 92
        %v2374 = vpop.permute.xlu0 %2373
        %2377 = vrot.lane.b32.xlu0 %v1173, 96
        %v2378 = vpop.permute.xlu0 %2377
        %2381 = vrot.lane.b32.xlu0 %v1196, 100
        %v2382 = vpop.permute.xlu0 %2381
        %2385 = vrot.lane.b32.xlu0 %v1180, 104
        %v2386 = vpop.permute.xlu0 %2385
        %2389 = vrot.lane.b32.xlu0 %v1197, 108
        %v2390 = vpop.permute.xlu0 %2389
        %2393 = vrot.lane.b32.xlu0 %v1188, 112
        %v2394 = vpop.permute.xlu0 %2393
        %2397 = vrot.lane.b32.xlu0 %v1198, 116
        %v2398 = vpop.permute.xlu0 %2397
        %2401 = vrot.lane.b32.xlu0 %v1195, 120
        %v2402 = vpop.permute.xlu0 %2401
        %2405 = vrot.lane.b32.xlu0 %v1199, 124
        %v2406 = vpop.permute.xlu0 %2405
        %2409 = vrot.lane.b32.xlu0 %v1245, 4
        %v2410 = vpop.permute.xlu0 %2409
        %2413 = vrot.lane.b32.xlu0 %v1229, 8
        %v2414 = vpop.permute.xlu0 %2413
        %2417 = vrot.lane.b32.xlu0 %v1246, 12
        %v2418 = vpop.permute.xlu0 %2417
        %2421 = vrot.lane.b32.xlu0 %v1237, 16
        %v2422 = vpop.permute.xlu0 %2421
        %2425 = vrot.lane.b32.xlu0 %v1247, 20
        %v2426 = vpop.permute.xlu0 %2425
        %2429 = vrot.lane.b32.xlu0 %v1244, 24
        %v2430 = vpop.permute.xlu0 %2429
        %2433 = vrot.lane.b32.xlu0 %v1248, 28
        %v2434 = vpop.permute.xlu0 %2433
        %2437 = vrot.lane.b32.xlu0 %v1271, 32
        %v2438 = vpop.permute.xlu0 %2437
        %2441 = vrot.lane.b32.xlu0 %v1294, 36
        %v2442 = vpop.permute.xlu0 %2441
        %2445 = vrot.lane.b32.xlu0 %v1278, 40
        %v2446 = vpop.permute.xlu0 %2445
        %2449 = vrot.lane.b32.xlu0 %v1295, 44
        %v2450 = vpop.permute.xlu0 %2449
        %2453 = vrot.lane.b32.xlu0 %v1286, 48
        %v2454 = vpop.permute.xlu0 %2453
        %2457 = vrot.lane.b32.xlu0 %v1296, 52
        %v2458 = vpop.permute.xlu0 %2457
        %2461 = vrot.lane.b32.xlu0 %v1293, 56
        %v2462 = vpop.permute.xlu0 %2461
        %2465 = vrot.lane.b32.xlu0 %v1297, 60
        %v2466 = vpop.permute.xlu0 %2465
        %2469 = vrot.lane.b32.xlu0 %v1320, 64
        %v2470 = vpop.permute.xlu0 %2469
        %2473 = vrot.lane.b32.xlu0 %v1343, 68
        %v2474 = vpop.permute.xlu0 %2473
        %2477 = vrot.lane.b32.xlu0 %v1327, 72
        %v2478 = vpop.permute.xlu0 %2477
        %2481 = vrot.lane.b32.xlu0 %v1344, 76
        %v2482 = vpop.permute.xlu0 %2481
        %2485 = vrot.lane.b32.xlu0 %v1335, 80
        %v2486 = vpop.permute.xlu0 %2485
        %2489 = vrot.lane.b32.xlu0 %v1345, 84
        %v2490 = vpop.permute.xlu0 %2489
        %2493 = vrot.lane.b32.xlu0 %v1342, 88
        %v2494 = vpop.permute.xlu0 %2493
        %2497 = vrot.lane.b32.xlu0 %v1346, 92
        %v2498 = vpop.permute.xlu0 %2497
        %2501 = vrot.lane.b32.xlu0 %v1369, 96
        %v2502 = vpop.permute.xlu0 %2501
        %2505 = vrot.lane.b32.xlu0 %v1392, 100
        %v2506 = vpop.permute.xlu0 %2505
        %2509 = vrot.lane.b32.xlu0 %v1376, 104
        %v2510 = vpop.permute.xlu0 %2509
        %2513 = vrot.lane.b32.xlu0 %v1393, 108
        %v2514 = vpop.permute.xlu0 %2513
        %2517 = vrot.lane.b32.xlu0 %v1384, 112
        %v2518 = vpop.permute.xlu0 %2517
        %2521 = vrot.lane.b32.xlu0 %v1394, 116
        %v2522 = vpop.permute.xlu0 %2521
        %2525 = vrot.lane.b32.xlu0 %v1391, 120
        %v2526 = vpop.permute.xlu0 %2525
        %2529 = vrot.lane.b32.xlu0 %v1395, 124
        %v2530 = vpop.permute.xlu0 %2529
        %2533 = vrot.lane.b32.xlu0 %v1441, 4
        %v2534 = vpop.permute.xlu0 %2533
        %2537 = vrot.lane.b32.xlu0 %v1425, 8
        %v2538 = vpop.permute.xlu0 %2537
        %2541 = vrot.lane.b32.xlu0 %v1442, 12
        %v2542 = vpop.permute.xlu0 %2541
        %2545 = vrot.lane.b32.xlu0 %v1433, 16
        %v2546 = vpop.permute.xlu0 %2545
        %2549 = vrot.lane.b32.xlu0 %v1443, 20
        %v2550 = vpop.permute.xlu0 %2549
        %2553 = vrot.lane.b32.xlu0 %v1440, 24
        %v2554 = vpop.permute.xlu0 %2553
        %2557 = vrot.lane.b32.xlu0 %v1444, 28
        %v2558 = vpop.permute.xlu0 %2557
        %2561 = vrot.lane.b32.xlu0 %v1467, 32
        %v2562 = vpop.permute.xlu0 %2561
        %2565 = vrot.lane.b32.xlu0 %v1490, 36
        %v2566 = vpop.permute.xlu0 %2565
        %2569 = vrot.lane.b32.xlu0 %v1474, 40
        %v2570 = vpop.permute.xlu0 %2569
        %2573 = vrot.lane.b32.xlu0 %v1491, 44
        %v2574 = vpop.permute.xlu0 %2573
        %2577 = vrot.lane.b32.xlu0 %v1482, 48
        %v2578 = vpop.permute.xlu0 %2577
        %2581 = vrot.lane.b32.xlu0 %v1492, 52
        %v2582 = vpop.permute.xlu0 %2581
        %2585 = vrot.lane.b32.xlu0 %v1489, 56
        %v2586 = vpop.permute.xlu0 %2585
        %2589 = vrot.lane.b32.xlu0 %v1493, 60
        %v2590 = vpop.permute.xlu0 %2589
        %2593 = vrot.lane.b32.xlu0 %v1516, 64
        %v2594 = vpop.permute.xlu0 %2593
        %2597 = vrot.lane.b32.xlu0 %v1539, 68
        %v2598 = vpop.permute.xlu0 %2597
        %2601 = vrot.lane.b32.xlu0 %v1523, 72
        %v2602 = vpop.permute.xlu0 %2601
        %2605 = vrot.lane.b32.xlu0 %v1540, 76
        %v2606 = vpop.permute.xlu0 %2605
        %2609 = vrot.lane.b32.xlu0 %v1531, 80
        %v2610 = vpop.permute.xlu0 %2609
        %2613 = vrot.lane.b32.xlu0 %v1541, 84
        %v2614 = vpop.permute.xlu0 %2613
        %2617 = vrot.lane.b32.xlu0 %v1538, 88
        %v2618 = vpop.permute.xlu0 %2617
        %2621 = vrot.lane.b32.xlu0 %v1542, 92
        %v2622 = vpop.permute.xlu0 %2621
        %2625 = vrot.lane.b32.xlu0 %v1565, 96
        %v2626 = vpop.permute.xlu0 %2625
        %2629 = vrot.lane.b32.xlu0 %v1588, 100
        %v2630 = vpop.permute.xlu0 %2629
        %2633 = vrot.lane.b32.xlu0 %v1572, 104
        %v2634 = vpop.permute.xlu0 %2633
        %2637 = vrot.lane.b32.xlu0 %v1589, 108
        %v2638 = vpop.permute.xlu0 %2637
        %2641 = vrot.lane.b32.xlu0 %v1580, 112
        %v2642 = vpop.permute.xlu0 %2641
        %2645 = vrot.lane.b32.xlu0 %v1590, 116
        %v2646 = vpop.permute.xlu0 %2645
        %2649 = vrot.lane.b32.xlu0 %v1587, 120
        %v2650 = vpop.permute.xlu0 %2649
        %2653 = vrot.lane.b32.xlu0 %v1591, 124
        %v2654 = vpop.permute.xlu0 %2653
        %2657 = vrot.lane.b32.xlu0 %v1637, 4
        %v2658 = vpop.permute.xlu0 %2657
        %2661 = vrot.lane.b32.xlu0 %v1621, 8
        %v2662 = vpop.permute.xlu0 %2661
        %2665 = vrot.lane.b32.xlu0 %v1638, 12
        %v2666 = vpop.permute.xlu0 %2665
        %2669 = vrot.lane.b32.xlu0 %v1629, 16
        %v2670 = vpop.permute.xlu0 %2669
        %2673 = vrot.lane.b32.xlu0 %v1639, 20
        %v2674 = vpop.permute.xlu0 %2673
        %2677 = vrot.lane.b32.xlu0 %v1636, 24
        %v2678 = vpop.permute.xlu0 %2677
        %2681 = vrot.lane.b32.xlu0 %v1640, 28
        %v2682 = vpop.permute.xlu0 %2681
        %2685 = vrot.lane.b32.xlu0 %v1663, 32
        %v2686 = vpop.permute.xlu0 %2685
        %2689 = vrot.lane.b32.xlu0 %v1686, 36
        %v2690 = vpop.permute.xlu0 %2689
        %2693 = vrot.lane.b32.xlu0 %v1670, 40
        %v2694 = vpop.permute.xlu0 %2693
        %2697 = vrot.lane.b32.xlu0 %v1687, 44
        %v2698 = vpop.permute.xlu0 %2697
        %2701 = vrot.lane.b32.xlu0 %v1678, 48
        %v2702 = vpop.permute.xlu0 %2701
        %2705 = vrot.lane.b32.xlu0 %v1688, 52
        %v2706 = vpop.permute.xlu0 %2705
        %2709 = vrot.lane.b32.xlu0 %v1685, 56
        %v2710 = vpop.permute.xlu0 %2709
        %2713 = vrot.lane.b32.xlu0 %v1689, 60
        %v2714 = vpop.permute.xlu0 %2713
        %2717 = vrot.lane.b32.xlu0 %v1712, 64
        %v2718 = vpop.permute.xlu0 %2717
        %2721 = vrot.lane.b32.xlu0 %v1735, 68
        %v2722 = vpop.permute.xlu0 %2721
        %2725 = vrot.lane.b32.xlu0 %v1719, 72
        %v2726 = vpop.permute.xlu0 %2725
        %2729 = vrot.lane.b32.xlu0 %v1736, 76
        %v2730 = vpop.permute.xlu0 %2729
        %2733 = vrot.lane.b32.xlu0 %v1727, 80
        %v2734 = vpop.permute.xlu0 %2733
        %2737 = vrot.lane.b32.xlu0 %v1737, 84
        %v2738 = vpop.permute.xlu0 %2737
        %2741 = vrot.lane.b32.xlu0 %v1734, 88
        %v2742 = vpop.permute.xlu0 %2741
        %2745 = vrot.lane.b32.xlu0 %v1738, 92
        %v2746 = vpop.permute.xlu0 %2745
        %2749 = vrot.lane.b32.xlu0 %v1761, 96
        %v2750 = vpop.permute.xlu0 %2749
        %2753 = vrot.lane.b32.xlu0 %v1784, 100
        %v2754 = vpop.permute.xlu0 %2753
        %2757 = vrot.lane.b32.xlu0 %v1768, 104
        %v2758 = vpop.permute.xlu0 %2757
        %2761 = vrot.lane.b32.xlu0 %v1785, 108
        %v2762 = vpop.permute.xlu0 %2761
        %2765 = vrot.lane.b32.xlu0 %v1776, 112
        %v2766 = vpop.permute.xlu0 %2765
        %2769 = vrot.lane.b32.xlu0 %v1786, 116
        %v2770 = vpop.permute.xlu0 %2769
        %2773 = vrot.lane.b32.xlu0 %v1783, 120
        %v2774 = vpop.permute.xlu0 %2773
        %2777 = vrot.lane.b32.xlu0 %v1787, 124
        %v2778 = vpop.permute.xlu0 %2777
        %vm2780 = vcmask 31744
        %v2781 = vsel %vm2780, %v242, %v1790
        %vm2782 = vcmask 64512
        %v2783 = vsel %vm2782, %v2781, %v1794
        %vm2784 = vcmask 97280
        %v2785 = vsel %vm2784, %v2783, %v1798
        %vm2786 = vcmask 130048
        %v2787 = vsel %vm2786, %v2785, %v1802
        %vm2788 = vcmask 162816
        %v2789 = vsel %vm2788, %v2787, %v1806
        %vm2790 = vcmask 195584
        %v2791 = vsel %vm2790, %v2789, %v1810
        %vm2792 = vcmask 228352
        %v2793 = vsel %vm2792, %v2791, %v1814
        %vm2794 = vcmask 261120
        %v2795 = vsel %vm2794, %v2793, %v1818
        %vm2796 = vcmask 293888
        %v2797 = vsel %vm2796, %v2795, %v1822
        %vm2798 = vcmask 326656
        %v2799 = vsel %vm2798, %v2797, %v1826
        %vm2800 = vcmask 359424
        %v2801 = vsel %vm2800, %v2799, %v1830
        %vm2802 = vcmask 392192
        %v2803 = vsel %vm2802, %v2801, %v1834
        %vm2804 = vcmask 424960
        %v2805 = vsel %vm2804, %v2803, %v1838
        %vm2806 = vcmask 457728
        %v2807 = vsel %vm2806, %v2805, %v1842
        %vm2808 = vcmask 490496
        %v2809 = vsel %vm2808, %v2807, %v1846
        %vm2810 = vcmask 523264
        %v2811 = vsel %vm2810, %v2809, %v1850
        %vm2812 = vcmask 556032
        %v2813 = vsel %vm2812, %v2811, %v1854
        %vm2814 = vcmask 588800
        %v2815 = vsel %vm2814, %v2813, %v1858
        %vm2816 = vcmask 621568
        %v2817 = vsel %vm2816, %v2815, %v1862
        %vm2818 = vcmask 654336
        %v2819 = vsel %vm2818, %v2817, %v1866
        %vm2820 = vcmask 687104
        %v2821 = vsel %vm2820, %v2819, %v1870
        %vm2822 = vcmask 719872
        %v2823 = vsel %vm2822, %v2821, %v1874
        %vm2824 = vcmask 752640
        %v2825 = vsel %vm2824, %v2823, %v1878
        %vm2826 = vcmask 785408
        %v2827 = vsel %vm2826, %v2825, %v1882
        %vm2828 = vcmask 818176
        %v2829 = vsel %vm2828, %v2827, %v1886
        %vm2830 = vcmask 850944
        %v2831 = vsel %vm2830, %v2829, %v1890
        %vm2832 = vcmask 883712
        %v2833 = vsel %vm2832, %v2831, %v1894
        %vm2834 = vcmask 916480
        %v2835 = vsel %vm2834, %v2833, %v1898
        %vm2836 = vcmask 949248
        %v2837 = vsel %vm2836, %v2835, %v1902
        %vm2838 = vcmask 982016
        %v2839 = vsel %vm2838, %v2837, %v1906
        %vm2840 = vcmask 1014784
        %v2841 = vsel %vm2840, %v2839, %v1910
        %v2842 = vsel %vm2780, %v438, %v1914
        %v2843 = vsel %vm2782, %v2842, %v1918
        %v2844 = vsel %vm2784, %v2843, %v1922
        %v2845 = vsel %vm2786, %v2844, %v1926
        %v2846 = vsel %vm2788, %v2845, %v1930
        %v2847 = vsel %vm2790, %v2846, %v1934
        %v2848 = vsel %vm2792, %v2847, %v1938
        %v2849 = vsel %vm2794, %v2848, %v1942
        %v2850 = vsel %vm2796, %v2849, %v1946
        %v2851 = vsel %vm2798, %v2850, %v1950
        %v2852 = vsel %vm2800, %v2851, %v1954
        %v2853 = vsel %vm2802, %v2852, %v1958
        %v2854 = vsel %vm2804, %v2853, %v1962
        %v2855 = vsel %vm2806, %v2854, %v1966
        %v2856 = vsel %vm2808, %v2855, %v1970
        %v2857 = vsel %vm2810, %v2856, %v1974
        %v2858 = vsel %vm2812, %v2857, %v1978
        %v2859 = vsel %vm2814, %v2858, %v1982
        %v2860 = vsel %vm2816, %v2859, %v1986
        %v2861 = vsel %vm2818, %v2860, %v1990
        %v2862 = vsel %vm2820, %v2861, %v1994
        %v2863 = vsel %vm2822, %v2862, %v1998
        %v2864 = vsel %vm2824, %v2863, %v2002
        %v2865 = vsel %vm2826, %v2864, %v2006
        %v2866 = vsel %vm2828, %v2865, %v2010
        %v2867 = vsel %vm2830, %v2866, %v2014
        %v2868 = vsel %vm2832, %v2867, %v2018
        %v2869 = vsel %vm2834, %v2868, %v2022
        %v2870 = vsel %vm2836, %v2869, %v2026
        %v2871 = vsel %vm2838, %v2870, %v2030
        %v2872 = vsel %vm2840, %v2871, %v2034
        %v2873 = vsel %vm2780, %v634, %v2038
        %v2874 = vsel %vm2782, %v2873, %v2042
        %v2875 = vsel %vm2784, %v2874, %v2046
        %v2876 = vsel %vm2786, %v2875, %v2050
        %v2877 = vsel %vm2788, %v2876, %v2054
        %v2878 = vsel %vm2790, %v2877, %v2058
        %v2879 = vsel %vm2792, %v2878, %v2062
        %v2880 = vsel %vm2794, %v2879, %v2066
        %v2881 = vsel %vm2796, %v2880, %v2070
        %v2882 = vsel %vm2798, %v2881, %v2074
        %v2883 = vsel %vm2800, %v2882, %v2078
        %v2884 = vsel %vm2802, %v2883, %v2082
        %v2885 = vsel %vm2804, %v2884, %v2086
        %v2886 = vsel %vm2806, %v2885, %v2090
        %v2887 = vsel %vm2808, %v2886, %v2094
        %v2888 = vsel %vm2810, %v2887, %v2098
        %v2889 = vsel %vm2812, %v2888, %v2102
        %v2890 = vsel %vm2814, %v2889, %v2106
        %v2891 = vsel %vm2816, %v2890, %v2110
        %v2892 = vsel %vm2818, %v2891, %v2114
        %v2893 = vsel %vm2820, %v2892, %v2118
        %v2894 = vsel %vm2822, %v2893, %v2122
        %v2895 = vsel %vm2824, %v2894, %v2126
        %v2896 = vsel %vm2826, %v2895, %v2130
        %v2897 = vsel %vm2828, %v2896, %v2134
        %v2898 = vsel %vm2830, %v2897, %v2138
        %v2899 = vsel %vm2832, %v2898, %v2142
        %v2900 = vsel %vm2834, %v2899, %v2146
        %v2901 = vsel %vm2836, %v2900, %v2150
        %v2902 = vsel %vm2838, %v2901, %v2154
        %v2903 = vsel %vm2840, %v2902, %v2158
        %v2904 = vsel %vm2780, %v830, %v2162
        %v2905 = vsel %vm2782, %v2904, %v2166
        %v2906 = vsel %vm2784, %v2905, %v2170
        %v2907 = vsel %vm2786, %v2906, %v2174
        %v2908 = vsel %vm2788, %v2907, %v2178
        %v2909 = vsel %vm2790, %v2908, %v2182
        %v2910 = vsel %vm2792, %v2909, %v2186
        %v2911 = vsel %vm2794, %v2910, %v2190
        %v2912 = vsel %vm2796, %v2911, %v2194
        %v2913 = vsel %vm2798, %v2912, %v2198
        %v2914 = vsel %vm2800, %v2913, %v2202
        %v2915 = vsel %vm2802, %v2914, %v2206
        %v2916 = vsel %vm2804, %v2915, %v2210
        %v2917 = vsel %vm2806, %v2916, %v2214
        %v2918 = vsel %vm2808, %v2917, %v2218
        %v2919 = vsel %vm2810, %v2918, %v2222
        %v2920 = vsel %vm2812, %v2919, %v2226
        %v2921 = vsel %vm2814, %v2920, %v2230
        %v2922 = vsel %vm2816, %v2921, %v2234
        %v2923 = vsel %vm2818, %v2922, %v2238
        %v2924 = vsel %vm2820, %v2923, %v2242
        %v2925 = vsel %vm2822, %v2924, %v2246
        %v2926 = vsel %vm2824, %v2925, %v2250
        %v2927 = vsel %vm2826, %v2926, %v2254
        %v2928 = vsel %vm2828, %v2927, %v2258
        %v2929 = vsel %vm2830, %v2928, %v2262
        %v2930 = vsel %vm2832, %v2929, %v2266
        %v2931 = vsel %vm2834, %v2930, %v2270
        %v2932 = vsel %vm2836, %v2931, %v2274
        %v2933 = vsel %vm2838, %v2932, %v2278
        %v2934 = vsel %vm2840, %v2933, %v2282
        %v2935 = vsel %vm2780, %v1026, %v2286
        %v2936 = vsel %vm2782, %v2935, %v2290
        %v2937 = vsel %vm2784, %v2936, %v2294
        %v2938 = vsel %vm2786, %v2937, %v2298
        %v2939 = vsel %vm2788, %v2938, %v2302
        %v2940 = vsel %vm2790, %v2939, %v2306
        %v2941 = vsel %vm2792, %v2940, %v2310
        %v2942 = vsel %vm2794, %v2941, %v2314
        %v2943 = vsel %vm2796, %v2942, %v2318
        %v2944 = vsel %vm2798, %v2943, %v2322
        %v2945 = vsel %vm2800, %v2944, %v2326
        %v2946 = vsel %vm2802, %v2945, %v2330
        %v2947 = vsel %vm2804, %v2946, %v2334
        %v2948 = vsel %vm2806, %v2947, %v2338
        %v2949 = vsel %vm2808, %v2948, %v2342
        %v2950 = vsel %vm2810, %v2949, %v2346
        %v2951 = vsel %vm2812, %v2950, %v2350
        %v2952 = vsel %vm2814, %v2951, %v2354
        %v2953 = vsel %vm2816, %v2952, %v2358
        %v2954 = vsel %vm2818, %v2953, %v2362
        %v2955 = vsel %vm2820, %v2954, %v2366
        %v2956 = vsel %vm2822, %v2955, %v2370
        %v2957 = vsel %vm2824, %v2956, %v2374
        %v2958 = vsel %vm2826, %v2957, %v2378
        %v2959 = vsel %vm2828, %v2958, %v2382
        %v2960 = vsel %vm2830, %v2959, %v2386
        %v2961 = vsel %vm2832, %v2960, %v2390
        %v2962 = vsel %vm2834, %v2961, %v2394
        %v2963 = vsel %vm2836, %v2962, %v2398
        %v2964 = vsel %vm2838, %v2963, %v2402
        %v2965 = vsel %vm2840, %v2964, %v2406
        %v2966 = vsel %vm2780, %v1222, %v2410
        %v2967 = vsel %vm2782, %v2966, %v2414
        %v2968 = vsel %vm2784, %v2967, %v2418
        %v2969 = vsel %vm2786, %v2968, %v2422
        %v2970 = vsel %vm2788, %v2969, %v2426
        %v2971 = vsel %vm2790, %v2970, %v2430
        %v2972 = vsel %vm2792, %v2971, %v2434
        %v2973 = vsel %vm2794, %v2972, %v2438
        %v2974 = vsel %vm2796, %v2973, %v2442
        %v2975 = vsel %vm2798, %v2974, %v2446
        %v2976 = vsel %vm2800, %v2975, %v2450
        %v2977 = vsel %vm2802, %v2976, %v2454
        %v2978 = vsel %vm2804, %v2977, %v2458
        %v2979 = vsel %vm2806, %v2978, %v2462
        %v2980 = vsel %vm2808, %v2979, %v2466
        %v2981 = vsel %vm2810, %v2980, %v2470
        %v2982 = vsel %vm2812, %v2981, %v2474
        %v2983 = vsel %vm2814, %v2982, %v2478
        %v2984 = vsel %vm2816, %v2983, %v2482
        %v2985 = vsel %vm2818, %v2984, %v2486
        %v2986 = vsel %vm2820, %v2985, %v2490
        %v2987 = vsel %vm2822, %v2986, %v2494
        %v2988 = vsel %vm2824, %v2987, %v2498
        %v2989 = vsel %vm2826, %v2988, %v2502
        %v2990 = vsel %vm2828, %v2989, %v2506
        %v2991 = vsel %vm2830, %v2990, %v2510
        %v2992 = vsel %vm2832, %v2991, %v2514
        %v2993 = vsel %vm2834, %v2992, %v2518
        %v2994 = vsel %vm2836, %v2993, %v2522
        %v2995 = vsel %vm2838, %v2994, %v2526
        %v2996 = vsel %vm2840, %v2995, %v2530
        %v2997 = vsel %vm2780, %v1418, %v2534
        %v2998 = vsel %vm2782, %v2997, %v2538
        %v2999 = vsel %vm2784, %v2998, %v2542
        %v3000 = vsel %vm2786, %v2999, %v2546
        %v3001 = vsel %vm2788, %v3000, %v2550
        %v3002 = vsel %vm2790, %v3001, %v2554
        %v3003 = vsel %vm2792, %v3002, %v2558
        %v3004 = vsel %vm2794, %v3003, %v2562
        %v3005 = vsel %vm2796, %v3004, %v2566
        %v3006 = vsel %vm2798, %v3005, %v2570
        %v3007 = vsel %vm2800, %v3006, %v2574
        %v3008 = vsel %vm2802, %v3007, %v2578
        %v3009 = vsel %vm2804, %v3008, %v2582
        %v3010 = vsel %vm2806, %v3009, %v2586
        %v3011 = vsel %vm2808, %v3010, %v2590
        %v3012 = vsel %vm2810, %v3011, %v2594
        %v3013 = vsel %vm2812, %v3012, %v2598
        %v3014 = vsel %vm2814, %v3013, %v2602
        %v3015 = vsel %vm2816, %v3014, %v2606
        %v3016 = vsel %vm2818, %v3015, %v2610
        %v3017 = vsel %vm2820, %v3016, %v2614
        %v3018 = vsel %vm2822, %v3017, %v2618
        %v3019 = vsel %vm2824, %v3018, %v2622
        %v3020 = vsel %vm2826, %v3019, %v2626
        %v3021 = vsel %vm2828, %v3020, %v2630
        %v3022 = vsel %vm2830, %v3021, %v2634
        %v3023 = vsel %vm2832, %v3022, %v2638
        %v3024 = vsel %vm2834, %v3023, %v2642
        %v3025 = vsel %vm2836, %v3024, %v2646
        %v3026 = vsel %vm2838, %v3025, %v2650
        %v3027 = vsel %vm2840, %v3026, %v2654
        %v3028 = vsel %vm2780, %v1614, %v2658
        %v3029 = vsel %vm2782, %v3028, %v2662
        %v3030 = vsel %vm2784, %v3029, %v2666
        %v3031 = vsel %vm2786, %v3030, %v2670
        %v3032 = vsel %vm2788, %v3031, %v2674
        %v3033 = vsel %vm2790, %v3032, %v2678
        %v3034 = vsel %vm2792, %v3033, %v2682
        %v3035 = vsel %vm2794, %v3034, %v2686
        %v3036 = vsel %vm2796, %v3035, %v2690
        %v3037 = vsel %vm2798, %v3036, %v2694
        %v3038 = vsel %vm2800, %v3037, %v2698
        %v3039 = vsel %vm2802, %v3038, %v2702
        %v3040 = vsel %vm2804, %v3039, %v2706
        %v3041 = vsel %vm2806, %v3040, %v2710
        %v3042 = vsel %vm2808, %v3041, %v2714
        %v3043 = vsel %vm2810, %v3042, %v2718
        %v3044 = vsel %vm2812, %v3043, %v2722
        %v3045 = vsel %vm2814, %v3044, %v2726
        %v3046 = vsel %vm2816, %v3045, %v2730
        %v3047 = vsel %vm2818, %v3046, %v2734
        %v3048 = vsel %vm2820, %v3047, %v2738
        %v3049 = vsel %vm2822, %v3048, %v2742
        %v3050 = vsel %vm2824, %v3049, %v2746
        %v3051 = vsel %vm2826, %v3050, %v2750
        %v3052 = vsel %vm2828, %v3051, %v2754
        %v3053 = vsel %vm2830, %v3052, %v2758
        %v3054 = vsel %vm2832, %v3053, %v2762
        %v3055 = vsel %vm2834, %v3054, %v2766
        %v3056 = vsel %vm2836, %v3055, %v2770
        %v3057 = vsel %vm2838, %v3056, %v2774
        %v3058 = vsel %vm2840, %v3057, %v2778
        %v3067 = vcombine.low %v2841, %v2872
        %v3068 = vcombine.low %v2903, %v2934
        %v3069 = vcombine.low %v2965, %v2996
        %v3070 = vcombine.low %v3027, %v3058
        %v3072 = vunpack.c.l.s4 1966171168
        %v3073 = vunpack.c.0.s8 %v3072
        %v3074 = vlaneseq
        %v3075 = vshrl.u32 %v3074, 7
        %v3076 = vsub.s32 %v3073, %v3075
        %v3077 = vrot.slane %v3067, %v3076
        %v3079 = vunpack.c.l.s4 1966171168
        %v3080 = vunpack.c.0.s8 %v3079
        %v3081 = vlaneseq
        %v3082 = vshrl.u32 %v3081, 7
        %v3083 = vsub.s32 %v3080, %v3082
        %v3084 = vrot.slane %v3068, %v3083
        %v3086 = vunpack.c.l.s4 1966171168
        %v3087 = vunpack.c.0.s8 %v3086
        %v3088 = vlaneseq
        %v3089 = vshrl.u32 %v3088, 7
        %v3090 = vsub.s32 %v3087, %v3089
        %v3091 = vrot.slane %v3069, %v3090
        %v3093 = vunpack.c.l.s4 1966171168
        %v3094 = vunpack.c.0.s8 %v3093
        %v3095 = vlaneseq
        %v3096 = vshrl.u32 %v3095, 7
        %v3097 = vsub.s32 %v3094, %v3096
        %v3098 = vrot.slane %v3070, %v3097
        %v3099 = vcombine.low %v3077, %v3084
        %v3100 = vcombine.low %v3091, %v3098
        %v3102 = vunpack.c.l.s4 1966171168
        %v3103 = vunpack.c.0.s8 %v3102
        %v3104 = vlaneseq
        %v3105 = vshrl.u32 %v3104, 7
        %v3106 = vsub.s32 %v3103, %v3105
        %v3107 = vrot.slane %v3099, %v3106
        %v3109 = vunpack.c.l.s4 1966171168
        %v3110 = vunpack.c.0.s8 %v3109
        %v3111 = vlaneseq
        %v3112 = vshrl.u32 %v3111, 7
        %v3113 = vsub.s32 %v3110, %v3112
        %v3114 = vrot.slane %v3100, %v3113
        %v3115 = vcombine.low %v3107, %v3114
        %3117 = vst [vmem:[%s150] sm:$0xff] %v3115
        %s3118 = sand.u32 %s68, 1
        %s3119 = scalar_lea.sflag [#allocation4], %s3118
        %s3120 = sand.u32 %s68, 1
        %s3121 = smul.addr %s3120, 8
        %s3122 = scalar_lea.vmem [#allocation5], %s3121
        // Predicated region
        $region29: #{tpu_custom_call.1} parent=23 // pred_check
          %p3123 = pneg %p78
        $region30: #{tpu_custom_call.1} parent=23 // pred_check_branch
          %3125 = sbr.rel (%p3123) target = $region32
        $region31: #{tpu_custom_call.1} parent=23 // pred_region
          %s3127 = ssub.s32 128, 128
          %3128 = vsyncadd %s3119, %s3127
          %s3129 = smul.addr %s23, 8
          %s3130 = smul.addr %s22, 8
          %s3131 = sadd.s32 %s3129, %s3130
          %s3132 = smul.addr %s3131, 16
          %s3133 = scalar_lea.hbm %s1, %s3132
          %s3135 = sshll.u32 %s3122, 4
          %s3136 = int_to_ptr.vmem [resolvable:$true] %s3135
          %3138 = dma.vmem_to_hbm [thread:$0]  %s3136, 128, %s3133, %s3119
        $region32: #{tpu_custom_call.1} parent=23 // pred_fallthru
          _
      $region24: #{tpu_custom_call.1} parent=5 // pred_fallthru
        _
      %p3139 = scmp.le.s32.totalorder 2, %s13
      // Predicated region
      $region33: #{tpu_custom_call.1} parent=5 // pred_check
        %p3140 = pneg %p3139
      $region34: #{tpu_custom_call.1} parent=5 // pred_check_branch
        %3142 = sbr.rel (%p3140) target = $region36
      $region35: #{tpu_custom_call.1} parent=5 // pred_region
        %s3143 = ssub.s32 %s13, 2
        // Predicated region
        $region37: #{tpu_custom_call.1} parent=35 // pred_check
          %p3144 = pneg %p84
        $region38: #{tpu_custom_call.1} parent=35 // pred_check_branch
          %3146 = sbr.rel (%p3144) target = $region40
        $region39: #{tpu_custom_call.1} parent=35 // pred_region
          %s3147 = sand.u32 %s69, 1
          %s3148 = scalar_lea.sflag [#allocation4], %s3147
          %s3149 = sand.u32 %s69, 1
          %s3150 = smul.addr %s3149, 8
          %s3151 = scalar_lea.vmem [#allocation5], %s3150
          %3152 = dma.done %s3148, 128
        $region40: #{tpu_custom_call.1} parent=35 // pred_fallthru
          _
      $region36: #{tpu_custom_call.1} parent=5 // pred_fallthru
        _
    $region6: #{tpu_custom_call.1} parent=1 // loop_footer
      %s17 = sadd.s32 1, %s13
    $region7: #{tpu_custom_call.1} parent=1 // loop_footer_branch
      %12 = sbr.rel target = $region3
    $region8: #{tpu_custom_call.1} parent=1 // loop_exit
      _
    %3153 = vsyncpa [#allocation3], 1
    %s3154 = scalar_lea.sflag [#allocation3], 1
    %3155 = vsyncpa %s3154, 1
    %3156 = vsyncpa [#allocation4], 1
    %s3157 = scalar_lea.sflag [#allocation4], 1
    %3158 = vsyncpa %s3157, 1

// kernel: tpu_custom_call.1
$region0: #{tpu_custom_call.1}
  #allocation0 [shape = 'u32[]', space=smem, size = 0x4, offset = 0x4, fixed_abs, tag = 'smem constant byte address 0x4 - core index']
  #allocation1 [shape = 'u32[144,128]{1,0:T(1,128)}', space=vmem, size = 0x12000, scoped, tag = 'internal scratch']
  %s0 = inlined_call_operand.hbm [shape: f32[2,4,256], index: 0, kind: input, shape index: {}]
  %s1 = inlined_call_operand.vmem [shape: f32[2,256,4], index: 1, kind: output, shape index: {}]
  %s2 = sld [smem:[#allocation0]]
  $region41: #{tpu_custom_call.1} parent=0
    _
  %s4 = ssub.s32 1, %s2
  %s5 = scalar_select 0, %s4, %s2
  $region1: #{tpu_custom_call.1} parent=0
    #allocation2 [shape = 'u8[8192]{0}', space=vmem, size = 0x2000, scoped, tag = 'input window, operand 0']
    #allocation3 [shape = 's32[2]{0}', space=sflag, size = 0x8, scoped, tag = 'scoped memory for tpu_custom_call.1']
    %6 = vsyncpa [#allocation3], 0
    %s7 = scalar_lea.sflag [#allocation3], 1
    %8 = vsyncpa %s7, 0
    loop: start=0, step=1, limit=4
    $region2: #{tpu_custom_call.1} parent=1 // loop_pre_header
      _
    $region3: #{tpu_custom_call.1} parent=1 // loop_header
      %s10 = sphi 0, %s14
      %p11 = scmp.ge.s32.totalorder %s10, 4
      %s17 = sphi 0, %s29
      %s18 = sphi 0, %s25
      %s19 = sphi 0, %s17
      %s20 = sphi 0, %s18
      %s21 = sphi 0, %s19
      %s22 = sphi 0, %s20
      %s34 = sphi 0, %s36
      %s37 = sphi 0, %s34
      %s38 = sphi 0, %s37
      %s54 = sphi 0, %s38
      %s62 = sphi 0, %s64
      %s65 = sphi 0, %s62
      %s66 = sphi 0, %s65
      %s82 = sphi 0, %s66
    $region4: #{tpu_custom_call.1} parent=1 // loop_header_branch
      %13 = sbr.rel (%p11) target = $region8
    $region5: #{tpu_custom_call.1} parent=1 // loop_body
      %s15 = ssub.s32 %s10, 1
      %s16 = ssub.s32 %s10, 2
      %s23 = sadd.s32 1, %s18
      %p24 = scmp.ge.s32.totalorder %s23, 1
      %s25 = scalar_select %p24, 0, %s23
      %s26 = sadd.s32 1, %s17
      %s27 = scalar_select %p24, %s26, %s17
      %p28 = scmp.ge.s32.totalorder %s27, 2
      %s29 = scalar_select %p28, 0, %s27
      %s30 = ssub.s32 %s17, %s29
      %s31 = ssub.s32 %s18, %s25
      %s32 = sor.u32 %s30, %s31
      %p33 = scmp.eq.s32.totalorder %s32, 0
      %s35 = sadd.s32 %s34, 1
      %s36 = scalar_select %p33, %s34, %s35
      %p39 = pneg %p33
      %p40 = scmp.eq.s32.totalorder %s10, 1
      %p41 = por %p39, %p40
      %p42 = scmp.ne.s32.totalorder %s34, %s37
      %p43 = scmp.eq.s32.totalorder %s10, 0
      %p44 = por %p42, %p43
      %p45 = scmp.ne.s32.totalorder %s34, %s37
      %p46 = scmp.eq.s32.totalorder %s15, 1
      %p47 = por %p45, %p46
      %p48 = scmp.ne.s32.totalorder %s37, %s38
      %p49 = scmp.eq.s32.totalorder %s15, 0
      %p50 = por %p48, %p49
      %p51 = scmp.ne.s32.totalorder %s37, %s38
      %p52 = scmp.eq.s32.totalorder %s16, 1
      %p53 = por %p51, %p52
      %p55 = scmp.ne.s32.totalorder %s38, %s54
      %p56 = scmp.eq.s32.totalorder %s16, 0
      %p57 = por %p55, %p56
      %s58 = ssub.s32 %s17, %s29
      %s59 = ssub.s32 %s18, %s25
      %s60 = sor.u32 %s58, %s59
      %p61 = scmp.eq.s32.totalorder %s60, 0
      %s63 = sadd.s32 %s62, 1
      %s64 = scalar_select %p61, %s62, %s63
      %p67 = pneg %p61
      %p68 = scmp.eq.s32.totalorder %s10, 1
      %p69 = por %p67, %p68
      %p70 = scmp.ne.s32.totalorder %s62, %s65
      %p71 = scmp.eq.s32.totalorder %s10, 0
      %p72 = por %p70, %p71
      %p73 = scmp.ne.s32.totalorder %s62, %s65
      %p74 = scmp.eq.s32.totalorder %s15, 1
      %p75 = por %p73, %p74
      %p76 = scmp.ne.s32.totalorder %s65, %s66
      %p77 = scmp.eq.s32.totalorder %s15, 0
      %p78 = por %p76, %p77
      %p79 = scmp.ne.s32.totalorder %s65, %s66
      %p80 = scmp.eq.s32.totalorder %s16, 1
      %p81 = por %p79, %p80
      %p83 = scmp.ne.s32.totalorder %s66, %s82
      %p84 = scmp.eq.s32.totalorder %s16, 0
      %p85 = por %p83, %p84
      %p86 = scmp.le.s32.totalorder 1, %s10
      %p87 = scmp.lt.s32.totalorder %s10, 3
      %p88 = pnand %p86, %p87
      %p89 = pneg %p88
      // Predicated region
      $region9: #{tpu_custom_call.1} parent=5 // pred_check
        _
      $region10: #{tpu_custom_call.1} parent=5 // pred_check_branch
        %91 = sbr.rel (%p88) target = $region12
      $region11: #{tpu_custom_call.1} parent=5 // pred_region
        %s92 = ssub.s32 %s10, 1
      $region12: #{tpu_custom_call.1} parent=5 // pred_fallthru
        _
      %p93 = scmp.lt.s32.totalorder %s10, 2
      // Predicated region
      $region13: #{tpu_custom_call.1} parent=5 // pred_check
        %p94 = pneg %p93
      $region14: #{tpu_custom_call.1} parent=5 // pred_check_branch
        %96 = sbr.rel (%p94) target = $region16
      $region15: #{tpu_custom_call.1} parent=5 // pred_region
        // Predicated region
        $region17: #{tpu_custom_call.1} parent=15 // pred_check
          %p97 = pneg %p44
        $region18: #{tpu_custom_call.1} parent=15 // pred_check_branch
          %99 = sbr.rel (%p97) target = $region20
        $region19: #{tpu_custom_call.1} parent=15 // pred_region
          %s100 = sand.u32 %s34, 1
          %s101 = scalar_lea.sflag [#allocation3], %s100
          %s102 = sand.u32 %s34, 1
          %s103 = smul.addr %s102, 8
          %s104 = scalar_lea.vmem [#allocation2], %s103
          %s105 = smul.u32 2, %s18
          %s107 = ssub.s32 128, 128
          %108 = vsyncadd %s101, %s107
          %s109 = smul.addr %s17, 2
          %s110 = sadd.s32 %s105, %s109
          %s111 = smul.addr %s110, 64
          %s112 = scalar_lea.hbm %s0, %s111
          %s114 = sshll.u32 %s104, 4
          %s115 = int_to_ptr.vmem [resolvable:$true] %s114
          %117 = dma.hbm_to_vmem [thread:$0]  %s112, 128, %s115, %s101
        $region20: #{tpu_custom_call.1} parent=15 // pred_fallthru
          _
      $region16: #{tpu_custom_call.1} parent=5 // pred_fallthru
        _
      %p118 = scmp.le.s32.totalorder 1, %s10
      %p119 = scmp.lt.s32.totalorder %s10, 3
      %p120 = pnand %p118, %p119
      %p121 = pneg %p120
      // Predicated region
      $region21: #{tpu_custom_call.1} parent=5 // pred_check
        _
      $region22: #{tpu_custom_call.1} parent=5 // pred_check_branch
        %123 = sbr.rel (%p120) target = $region24
      $region23: #{tpu_custom_call.1} parent=5 // pred_region
        %s124 = ssub.s32 %s10, 1
        %s125 = sand.u32 %s37, 1
        %s126 = scalar_lea.sflag [#allocation3], %s125
        %s127 = sand.u32 %s37, 1
        %s128 = smul.addr %s127, 8
        %s129 = scalar_lea.vmem [#allocation2], %s128
        // Predicated region
        $region25: #{tpu_custom_call.1} parent=23 // pred_check
          %p130 = pneg %p50
        $region26: #{tpu_custom_call.1} parent=23 // pred_check_branch
          %132 = sbr.rel (%p130) target = $region28
        $region27: #{tpu_custom_call.1} parent=23 // pred_region
          %133 = dma.done %s126, 128
        $region28: #{tpu_custom_call.1} parent=23 // pred_fallthru
          _
        %s134 = sand.u32 %s37, 1
        %s135 = scalar_lea.sflag [#allocation3], %s134
        %s136 = sand.u32 %s37, 1
        %s137 = smul.addr %s136, 8
        %s138 = scalar_lea.vmem [#allocation2], %s137
        %p139 = pneg %p50
        %p140 = pneg %p47
        %p141 = pneg %p78
        %p142 = pneg %p75
        %s143 = smul.u32 32, %s20
        %p144 = scmp.lt.s32.totalorder %s19, 1
        %s145 = scalar_select %p144, %s19, 1
        %p146 = scmp.lt.s32.totalorder %s143, 31
        %s147 = scalar_select %p146, %s143, 31
        %s148 = smul.addr %s145, 32
        %s149 = sadd.s32 %s147, %s148
        %s150 = smul.addr %s149, 8
        %s151 = scalar_lea.vmem %s1, %s150
        %s152 = smul.u32 2, %s20
        %s153 = smul.u32 32, %s20
        %p154 = scmp.lt.s32.totalorder %s19, 1
        %s155 = scalar_select %p154, %s19, 1
        %p156 = scmp.lt.s32.totalorder %s153, 31
        %s157 = scalar_select %p156, %s153, 31
        %s158 = smul.addr %s155, 32
        %s159 = sadd.s32 %s157, %s158
        %s160 = smul.addr %s159, 8
        %s161 = scalar_lea.vmem %s1, %s160
        %s162 = smul.u32 32, %s20
        %v163 = vld [vmem:[%s129] sm:$0xff]
        %v165 = vcombine.high %v163, %v163
        %167 = vxpose.xlu0.b32.start [1/16] %v163, 128
        %168 = vxpose.xlu0.b32.cont [2/16] 0.0, 128
        %169 = vxpose.xlu0.b32.cont [3/16] 0.0, 128
        %170 = vxpose.xlu0.b32.cont [4/16] 0.0, 128
        %171 = vxpose.xlu0.b32.cont [5/16] 0.0, 128
        %172 = vxpose.xlu0.b32.cont [6/16] 0.0, 128
        %173 = vxpose.xlu0.b32.cont [7/16] 0.0, 128
        %174 = vxpose.xlu0.b32.cont [8/16] 0.0, 128
        %175 = vxpose.xlu0.b32.cont [9/16] 0.0, 128
        %176 = vxpose.xlu0.b32.cont [10/16] 0.0, 128
        %177 = vxpose.xlu0.b32.cont [11/16] 0.0, 128
        %178 = vxpose.xlu0.b32.cont [12/16] 0.0, 128
        %179 = vxpose.xlu0.b32.cont [13/16] 0.0, 128
        %180 = vxpose.xlu0.b32.cont [14/16] 0.0, 128
        %181 = vxpose.xlu0.b32.cont [15/16] 0.0, 128
        %182 = vxpose.xlu0.b32.end [16/16] 0.0, 128
        %v183 = vpop.trf.xlu0
        %v184 = vpop.trf.xlu0
        %v185 = vpop.trf.xlu0
        %v186 = vpop.trf.xlu0
        %v187 = vpop.trf.xlu0
        %v188 = vpop.trf.xlu0
        %v189 = vpop.trf.xlu0
        %v190 = vpop.trf.xlu0
        %v191 = vpop.trf.xlu0
        %v192 = vpop.trf.xlu0
        %v193 = vpop.trf.xlu0
        %v194 = vpop.trf.xlu0
        %v195 = vpop.trf.xlu0
        %v196 = vpop.trf.xlu0
        %v197 = vpop.trf.xlu0
        %v198 = vpop.trf.xlu0
        %199 = vxpose.xlu0.b32.start [1/16] %v165, 128
        %200 = vxpose.xlu0.b32.cont [2/16] 0.0, 128
        %201 = vxpose.xlu0.b32.cont [3/16] 0.0, 128
        %202 = vxpose.xlu0.b32.cont [4/16] 0.0, 128
        %203 = vxpose.xlu0.b32.cont [5/16] 0.0, 128
        %204 = vxpose.xlu0.b32.cont [6/16] 0.0, 128
        %205 = vxpose.xlu0.b32.cont [7/16] 0.0, 128
        %206 = vxpose.xlu0.b32.cont [8/16] 0.0, 128
        %207 = vxpose.xlu0.b32.cont [9/16] 0.0, 128
        %208 = vxpose.xlu0.b32.cont [10/16] 0.0, 128
        %209 = vxpose.xlu0.b32.cont [11/16] 0.0, 128
        %210 = vxpose.xlu0.b32.cont [12/16] 0.0, 128
        %211 = vxpose.xlu0.b32.cont [13/16] 0.0, 128
        %212 = vxpose.xlu0.b32.cont [14/16] 0.0, 128
        %213 = vxpose.xlu0.b32.cont [15/16] 0.0, 128
        %214 = vxpose.xlu0.b32.end [16/16] 0.0, 128
        %v215 = vpop.trf.xlu0
        %v216 = vpop.trf.xlu0
        %v217 = vpop.trf.xlu0
        %v218 = vpop.trf.xlu0
        %v219 = vpop.trf.xlu0
        %v220 = vpop.trf.xlu0
        %v221 = vpop.trf.xlu0
        %v222 = vpop.trf.xlu0
        %v223 = vpop.trf.xlu0
        %v224 = vpop.trf.xlu0
        %v225 = vpop.trf.xlu0
        %v226 = vpop.trf.xlu0
        %v227 = vpop.trf.xlu0
        %v228 = vpop.trf.xlu0
        %v229 = vpop.trf.xlu0
        %v230 = vpop.trf.xlu0
        %vm231 = vcmask 31744
        %232 = vst.msk [vmem:[%s161] sm:$0xff] %vm231, %v183
        %233 = vst.msk [vmem:[%s161 + $0x8] sm:$0xff] %vm231, %v184
        %234 = vst.msk [vmem:[%s161 + $0x10] sm:$0xff] %vm231, %v185
        %235 = vst.msk [vmem:[%s161 + $0x18] sm:$0xff] %vm231, %v186
        %236 = vst.msk [vmem:[%s161 + $0x20] sm:$0xff] %vm231, %v187
        %237 = vst.msk [vmem:[%s161 + $0x28] sm:$0xff] %vm231, %v188
        %238 = vst.msk [vmem:[%s161 + $0x30] sm:$0xff] %vm231, %v189
        %239 = vst.msk [vmem:[%s161 + $0x38] sm:$0xff] %vm231, %v190
        %240 = vst.msk [vmem:[%s161 + $0x40] sm:$0xff] %vm231, %v191
        %241 = vst.msk [vmem:[%s161 + $0x48] sm:$0xff] %vm231, %v192
        %242 = vst.msk [vmem:[%s161 + $0x50] sm:$0xff] %vm231, %v193
        %243 = vst.msk [vmem:[%s161 + $0x58] sm:$0xff] %vm231, %v194
        %244 = vst.msk [vmem:[%s161 + $0x60] sm:$0xff] %vm231, %v195
        %245 = vst.msk [vmem:[%s161 + $0x68] sm:$0xff] %vm231, %v196
        %246 = vst.msk [vmem:[%s161 + $0x70] sm:$0xff] %vm231, %v197
        %247 = vst.msk [vmem:[%s161 + $0x78] sm:$0xff] %vm231, %v198
        %248 = vst.msk [vmem:[%s161 + $0x80] sm:$0xff] %vm231, %v215
        %249 = vst.msk [vmem:[%s161 + $0x88] sm:$0xff] %vm231, %v216
        %250 = vst.msk [vmem:[%s161 + $0x90] sm:$0xff] %vm231, %v217
        %251 = vst.msk [vmem:[%s161 + $0x98] sm:$0xff] %vm231, %v218
        %252 = vst.msk [vmem:[%s161 + $0xa0] sm:$0xff] %vm231, %v219
        %253 = vst.msk [vmem:[%s161 + $0xa8] sm:$0xff] %vm231, %v220
        %254 = vst.msk [vmem:[%s161 + $0xb0] sm:$0xff] %vm231, %v221
        %255 = vst.msk [vmem:[%s161 + $0xb8] sm:$0xff] %vm231, %v222
        %256 = vst.msk [vmem:[%s161 + $0xc0] sm:$0xff] %vm231, %v223
        %257 = vst.msk [vmem:[%s161 + $0xc8] sm:$0xff] %vm231, %v224
        %258 = vst.msk [vmem:[%s161 + $0xd0] sm:$0xff] %vm231, %v225
        %259 = vst.msk [vmem:[%s161 + $0xd8] sm:$0xff] %vm231, %v226
        %260 = vst.msk [vmem:[%s161 + $0xe0] sm:$0xff] %vm231, %v227
        %261 = vst.msk [vmem:[%s161 + $0xe8] sm:$0xff] %vm231, %v228
        %262 = vst.msk [vmem:[%s161 + $0xf0] sm:$0xff] %vm231, %v229
        %263 = vst.msk [vmem:[%s161 + $0xf8] sm:$0xff] %vm231, %v230
        %s264 = smul.u32 32, %s20
        %p265 = scmp.lt.s32.totalorder %s19, 1
        %s266 = scalar_select %p265, %s19, 1
        %p267 = scmp.lt.s32.totalorder %s264, 31
        %s268 = scalar_select %p267, %s264, 31
        %s269 = smul.addr %s266, 32
        %s270 = sadd.s32 %s268, %s269
        %s271 = smul.addr %s270, 8
        %s272 = scalar_lea.vmem %s1, %s271
        // Predicated region
        $region29: #{tpu_custom_call.1} parent=23 // pred_check
          %p273 = pneg %p75
        $region30: #{tpu_custom_call.1} parent=23 // pred_check_branch
          %275 = sbr.rel (%p273) target = $region32
        $region31: #{tpu_custom_call.1} parent=23 // pred_region
          %s276 = smul.u32 32, %s20
        $region32: #{tpu_custom_call.1} parent=23 // pred_fallthru
          _
      $region24: #{tpu_custom_call.1} parent=5 // pred_fallthru
        _
      %p277 = scmp.le.s32.totalorder 2, %s10
      // Predicated region
      $region33: #{tpu_custom_call.1} parent=5 // pred_check
        %p278 = pneg %p277
      $region34: #{tpu_custom_call.1} parent=5 // pred_check_branch
        %280 = sbr.rel (%p278) target = $region36
      $region35: #{tpu_custom_call.1} parent=5 // pred_region
        %s281 = ssub.s32 %s10, 2
        // Predicated region
        $region37: #{tpu_custom_call.1} parent=35 // pred_check
          %p282 = pneg %p81
        $region38: #{tpu_custom_call.1} parent=35 // pred_check_branch
          %284 = sbr.rel (%p282) target = $region40
        $region39: #{tpu_custom_call.1} parent=35 // pred_region
          %s285 = smul.u32 32, %s22
          %p286 = scmp.lt.s32.totalorder %s21, 1
          %s287 = scalar_select %p286, %s21, 1
          %p288 = scmp.lt.s32.totalorder %s285, 31
          %s289 = scalar_select %p288, %s285, 31
          %s290 = smul.addr %s287, 32
          %s291 = sadd.s32 %s289, %s290
          %s292 = smul.addr %s291, 8
          %s293 = scalar_lea.vmem %s1, %s292
        $region40: #{tpu_custom_call.1} parent=35 // pred_fallthru
          _
      $region36: #{tpu_custom_call.1} parent=5 // pred_fallthru
        _
    $region6: #{tpu_custom_call.1} parent=1 // loop_footer
      %s14 = sadd.s32 1, %s10
    $region7: #{tpu_custom_call.1} parent=1 // loop_footer_branch
      %9 = sbr.rel target = $region3
    $region8: #{tpu_custom_call.1} parent=1 // loop_exit
      _
    %294 = vsyncpa [#allocation3], 1
    %s295 = scalar_lea.sflag [#allocation3], 1
    %296 = vsyncpa %s295, 1

</llo_original>
